<compile_context>
chip_gen: v5e
topology: v5e:2x2
jax: 0.10.0
libtpu: 0.0.40
codegen_flags: <defaults>
</compile_context>

<pallas_src>
import functools

import numpy as np
import jax
import jax.numpy as jnp
from jax import lax
from jax.experimental import pallas as pl
from jax.experimental.pallas import tpu as pltpu

try:  # reference uses scipy.optimize.linear_sum_assignment on host; use it if present
    from scipy.optimize import linear_sum_assignment as _scipy_lsa
except Exception:  # pragma: no cover
    _scipy_lsa = None

MATCH_NEGATIVE = -1
MATCH_UNCERTAIN = -2
_EPS = float(jnp.finfo(jnp.float32).eps)


def _round_up(n, m):
    return ((n + m - 1) // m) * m


def _choose_blocking(t_total, nc_pad, vmem_budget_bytes=8 << 20):
    """Pick (TBLK, num_steps).  >=2 steps when possible (feeds both v7x TCs), TBLK capped
    so the double-buffered working set stays well under v5e's 16 MiB scoped VMEM."""
    per_target = (24 * nc_pad + 8 * nc_pad + 8 * 128) * 4 * 2   # in + cost + aux, double-buffered
    max_tblk = max(1, min(32, vmem_budget_bytes // per_target))
    if t_total <= 1:
        return 1, 1
    tblk = max(1, min(max_tblk, (t_total + 1) // 2))
    steps = -(-t_total // tblk)
    return tblk, steps


# ----------------------------------------------------------------------------
# Pallas kernel 1 (fused): Hungarian cost matrices + per-query focal terms.
# Operand layout per target (24 sublanes x nc_pad lanes):
#   rows 0-5  : label box coords (coords on sublanes, label columns on lanes; clamped gather)
#   rows 8-15 : query tile (queries on sublanes; lanes 0-5 = box cx,cy,cz,sx,sy,sz; lane 6 = disc)
#   row 16    : positive-column mask,  row 17 : negative-column mask  (host precomputed)
# Outputs:
#   cost (TBLK, 8, nc_pad) : rows = queries, cols = [pos | neg | pad]
#   aux  (TBLK, 8, 128)    : lane 0 = focal(x, y=1), lane 1 = focal(x, y=0)  (no alpha)
# ----------------------------------------------------------------------------
def _cost_focal_kernel(op_ref, cost_ref, aux_ref, *, tblk, box_l1_w, box_giou_w,
                       disc_w, gamma, alpha, match_ce):
    nc = cost_ref.shape[2]
    for tt in range(tblk):                         # static unroll; tblk kept small (<= 32)
        op = op_ref[tt]                            # (24, nc) single load per target
        lab = op[0:8]                              # label boxes
        qt = op[8:16]                              # query tile
        msk = op[16:24]                            # column masks

        disc = qt[:, 6:7]                          # (8, 1)
        # shared transcendentals: one exp + one log1p feed sigmoid, softplus and focal
        e = jnp.exp(-jnp.abs(disc))
        inv1pe = 1.0 / (1.0 + e)
        p = jnp.where(disc >= 0.0, inv1pe, e * inv1pe)       # sigmoid(disc)
        sp = jnp.log1p(e)                                    # softplus(-|disc|)
        relu = jnp.maximum(disc, 0.0)
        ce1 = relu - disc + sp                               # BCE-with-logits, label = 1
        ce0 = relu + sp                                      # BCE-with-logits, label = 0
        t1, t0 = 1.0 - p, p
        if gamma == 2.0:                                     # square instead of pow
            f1, f0 = ce1 * (t1 * t1), ce0 * (t0 * t0)
        else:
            f1, f0 = ce1 * t1 ** gamma, ce0 * t0 ** gamma

        if match_ce:
            dpos = disc_w * (1.0 - p)
            dneg = disc_w * p
        else:
            a1 = f1 if alpha is None else alpha * f1
            a0 = f0 if alpha is None else (1.0 - alpha) * f0
            dpos = disc_w * a1
            dneg = disc_w * a0

        shp = (8, nc)
        l1 = jnp.zeros(shp, jnp.float32)
        inter = jnp.ones(shp, jnp.float32)
        enc = jnp.ones(shp, jnp.float32)
        vol_q = jnp.ones((8, 1), jnp.float32)
        vol_t = jnp.ones((1, nc), jnp.float32)
        for d in range(3):                                   # unrolled at trace time
            qc, qs = qt[:, d:d + 1], qt[:, d + 3:d + 4]
            tc, ts = lab[d:d + 1, :], lab[d + 3:d + 4, :]
            l1 = l1 + jnp.abs(qc - tc) + jnp.abs(qs - ts)
            qmin, qmax = qc - 0.5 * qs, qc + 0.5 * qs
            tmin, tmax = tc - 0.5 * ts, tc + 0.5 * ts
            inter = inter * jnp.maximum(jnp.minimum(qmax, tmax) - jnp.maximum(qmin, tmin), 0.0)
            enc = enc * jnp.maximum(jnp.maximum(qmax, tmax) - jnp.minimum(qmin, tmin), 0.0)
            vol_q = vol_q * (qmax - qmin)
            vol_t = vol_t * (tmax - tmin)
        l1 = l1 * (1.0 / 6.0)
        union = vol_q + vol_t - inter
        iou = inter / (union + _EPS)                         # exact division: stable matching
        giou = iou - (enc - union) / (enc + _EPS)
        box_cost = box_l1_w * l1 + box_giou_w * (1.0 - giou)

        pos_col = msk[0:1, :]
        neg_col = msk[1:2, :]
        cost_ref[tt] = pos_col * (dpos + box_cost) + neg_col * dneg

        lane = lax.broadcasted_iota(jnp.int32, (8, 128), 1)
        aux_ref[tt] = jnp.where(lane == 0, f1, jnp.where(lane == 1, f0, 0.0))


def _run_cost_focal(comb, *, tblk, steps, nc_pad, box_l1_w, box_giou_w, disc_w,
                    gamma, alpha, match_ce):
    t_pad = tblk * steps
    kernel = functools.partial(
        _cost_focal_kernel, tblk=tblk, box_l1_w=float(box_l1_w),
        box_giou_w=float(box_giou_w), disc_w=float(disc_w), gamma=float(gamma),
        alpha=None if alpha is None else float(alpha), match_ce=bool(match_ce))
    return pl.pallas_call(
        kernel,
        out_shape=(jax.ShapeDtypeStruct((t_pad, 8, nc_pad), jnp.float32),
                   jax.ShapeDtypeStruct((t_pad, 8, 128), jnp.float32)),
        grid=(steps,),
        in_specs=[pl.BlockSpec((tblk, 24, nc_pad), lambda s: (s, 0, 0))],
        out_specs=(pl.BlockSpec((tblk, 8, nc_pad), lambda s: (s, 0, 0)),
                   pl.BlockSpec((tblk, 8, 128), lambda s: (s, 0, 0))),
        compiler_params=pltpu.CompilerParams(dimension_semantics=("parallel",)),
    )(comb)


# ----------------------------------------------------------------------------
# Pallas kernel 2: matched-pair box terms — one lane-dense (8, Kpad) output:
#   row 0 = per-pair L1 mean over 6 coords, row 1 = per-pair GIoU.
# Input (16, Kpad): rows 0-5 = query coords, rows 8-13 = target coords (pairs on lanes).
# ----------------------------------------------------------------------------
def _box_pair_kernel(x_ref, out_ref):
    x = x_ref[...]
    q = x[0:8]
    t = x[8:16]
    k = out_ref.shape[1]
    row = (1, k)
    l1 = jnp.zeros(row, jnp.float32)
    inter = jnp.ones(row, jnp.float32)
    enc = jnp.ones(row, jnp.float32)
    vol_q = jnp.ones(row, jnp.float32)
    vol_t = jnp.ones(row, jnp.float32)
    for d in range(3):
        qc, qs = q[d:d + 1, :], q[d + 3:d + 4, :]
        tc, ts = t[d:d + 1, :], t[d + 3:d + 4, :]
        l1 = l1 + jnp.abs(qc - tc) + jnp.abs(qs - ts)
        qmin, qmax = qc - 0.5 * qs, qc + 0.5 * qs
        tmin, tmax = tc - 0.5 * ts, tc + 0.5 * ts
        inter = inter * jnp.maximum(jnp.minimum(qmax, tmax) - jnp.maximum(qmin, tmin), 0.0)
        enc = enc * jnp.maximum(jnp.maximum(qmax, tmax) - jnp.minimum(qmin, tmin), 0.0)
        vol_q = vol_q * (qmax - qmin)
        vol_t = vol_t * (tmax - tmin)
    l1 = l1 * (1.0 / 6.0)
    union = vol_q + vol_t - inter
    iou = inter / (union + _EPS)
    giou = iou - (enc - union) / (enc + _EPS)
    ridx = lax.broadcasted_iota(jnp.int32, out_ref.shape, 0)
    out_ref[...] = jnp.where(ridx == 0, l1, jnp.where(ridx == 1, giou, 0.0))


def matched_box_pair_terms(pk, kpad):
    return pl.pallas_call(
        _box_pair_kernel,
        out_shape=jax.ShapeDtypeStruct((8, kpad), jnp.float32),
        grid=(1,),
        in_specs=[pl.BlockSpec((16, kpad), lambda i: (0, 0))],
        out_specs=pl.BlockSpec((8, kpad), lambda i: (0, 0)),
    )(pk)


# ----------------------------------------------------------------------------
# Host-side Hungarian matching (reference runs scipy on CPU under @torch.no_grad)
# ----------------------------------------------------------------------------
def _linear_sum_assignment(cost):
    """Minimum-cost assignment for cost (n, m), n <= m. Returns (row_ind, col_ind)."""
    cost = np.asarray(cost, dtype=np.float64)
    if _scipy_lsa is not None:
        return _scipy_lsa(cost)
    n, m = cost.shape
    assert n <= m, "expected n_rows <= n_cols"
    inf = float("inf")
    u = np.zeros(n + 1)
    v = np.zeros(m + 1)
    p = np.zeros(m + 1, dtype=np.int64)
    way = np.zeros(m + 1, dtype=np.int64)
    for i in range(1, n + 1):            # shortest augmenting path (Jonker-Volgenant style)
        p[0] = i
        j0 = 0
        minv = np.full(m + 1, inf)
        used = np.zeros(m + 1, dtype=bool)
        while True:
            used[j0] = True
            i0 = p[j0]
            delta = inf
            j1 = 0
            for j in range(1, m + 1):
                if not used[j]:
                    cur = cost[i0 - 1, j - 1] - u[i0] - v[j]
                    if cur < minv[j]:
                        minv[j] = cur
                        way[j] = j0
                    if minv[j] < delta:
                        delta = minv[j]
                        j1 = j
            for j in range(m + 1):
                if used[j]:
                    u[p[j]] += delta
                    v[j] -= delta
                else:
                    minv[j] -= delta
            j0 = j1
            if p[j0] == 0:
                break
        while True:
            j1 = way[j0]
            p[j0] = p[j1]
            j0 = j1
            if j0 == 0:
                break
    col4row = np.zeros(n, dtype=np.int64)
    for j in range(1, m + 1):
        if p[j] > 0:
            col4row[p[j] - 1] = j - 1
    return np.arange(n), col4row


# ----------------------------------------------------------------------------
# InstanceSamLoss (forward semantics preserved; compute batched across the batch)
# ----------------------------------------------------------------------------
class InstanceSamLoss:
    def __init__(self, *, mask_loss=None, use_neg_mask, box_l1_weight, box_giou_weight,
                 disc_weight, disc_focal_gamma, disc_focal_alpha=None, match_ce=True):
        self.mask_loss = mask_loss
        self.use_neg_mask = use_neg_mask
        self.box_l1_weight = float(box_l1_weight)
        self.box_giou_weight = float(box_giou_weight)
        self.disc_weight = float(disc_weight)
        self.disc_focal_gamma = float(disc_focal_gamma)
        self.disc_focal_alpha = None if disc_focal_alpha is None else float(disc_focal_alpha)
        self.match_ce = match_ce

    # --- matching from a precomputed cost block (host, no-grad) ---------------
    def _match_from_cost(self, cost_np, num_queries, num_pos, num_uncertain, offset):
        num_uncertain = min(max(num_queries - num_pos, 0), num_uncertain)
        num_neg = max(num_queries - num_pos - num_uncertain, 0)
        if num_queries == num_neg:
            return np.full(num_queries, MATCH_NEGATIVE, dtype=np.int64)
        n_cols = num_pos + num_neg + num_uncertain
        row, col = _linear_sum_assignment(cost_np[:num_queries, :n_cols])
        match = np.empty(num_queries, dtype=np.int64)
        match[row] = col
        # same statement order as the reference implementation
        match[match >= num_pos] = MATCH_NEGATIVE
        match[match >= num_pos + num_neg] = MATCH_UNCERTAIN
        match[match >= 0] += offset
        return match

    # --- batch forward ---------------------------------------------------------
    def forward(self, masks_logits, masks_logits_low_res, boxes_reg, disc_logit,
                masks_label, boxes_label, index_offsets):
        del masks_logits, masks_logits_low_res  # mask_loss=None / masks_label=None path
        batch_size = len(boxes_reg)
        gamma, alpha = self.disc_focal_gamma, self.disc_focal_alpha
        focal_key = f'focal-{gamma:.1f}'

        # ---- host bookkeeping (index_offsets expected host-resident; no device sync)
        offsets_np = [np.asarray(o) for o in index_offsets]
        num_targets = np.array([int(o.shape[0]) for o in offsets_np])
        t_total = int(num_targets.sum())
        if t_total == 0:
            return jnp.zeros((), jnp.float32), {}
        included = [i for i in range(batch_size) if num_targets[i] > 0]
        sample_of_target = np.repeat(np.arange(batch_size), num_targets)
        start_of_target = np.concatenate([offsets_np[i][:, 0] for i in included]).astype(np.int64)
        end_of_target = np.concatenate([offsets_np[i][:, 1] for i in included]).astype(np.int64)
        num_pos = end_of_target - start_of_target

        num_q = int(disc_logit[included[0]].shape[1])
        # TODO(synk): queries are packed on the 8 sublanes; tile over queries for num_q > 8.
        assert num_q <= 8, "cost kernel packs queries on sublanes (num_q <= 8)"
        max_npos = int(num_pos.max())
        nc_pad = max(128, _round_up(max(max_npos, num_q), 128))

        # ---- batched device operand assembly (few XLA dispatches, no host sync) ----
        br_all = jnp.concatenate(
            [boxes_reg[i][:, 1:, :].astype(jnp.float32) for i in included], axis=0)  # (T,Q,6)
        dl_all = jnp.concatenate(
            [disc_logit[i].astype(jnp.float32) for i in included], axis=0)           # (T,Q)
        bl_list = [boxes_label[i].astype(jnp.float32) for i in included]
        label_counts = np.array([int(b.shape[0]) for b in bl_list])
        label_base = np.concatenate([[0], np.cumsum(label_counts)])
        n_labels = int(label_base[-1])
        bl_all = (jnp.concatenate(bl_list, axis=0) if n_labels > 0
                  else jnp.zeros((1, 6), jnp.float32))
        base_for_sample = {s: int(label_base[j]) for j, s in enumerate(included)}
        base_of_target = np.array([base_for_sample[s] for s in sample_of_target])

        lanes = np.arange(nc_pad)
        gidx = (base_of_target[:, None] + start_of_target[:, None]
                + np.minimum(lanes[None, :], np.maximum(num_pos[:, None] - 1, 0)))
        gidx = np.clip(gidx, 0, max(n_labels - 1, 0)).astype(np.int32)
        lab_all = jnp.transpose(bl_all[jnp.asarray(gidx)], (0, 2, 1))    # (T, 6, nc_pad)

        num_neg = np.maximum(num_q - num_pos, 0)   # num_uncertain == 0 (reference compute_loss)
        pos_cols = (lanes[None, :] < num_pos[:, None]).astype(np.float32)
        neg_cols = ((lanes[None, :] >= num_pos[:, None])
                    & (lanes[None, :] < (num_pos + num_neg)[:, None])).astype(np.float32)

        tblk, steps = _choose_blocking(t_total, nc_pad)
        t_pad = tblk * steps
        comb = jnp.zeros((t_pad, 24, nc_pad), jnp.float32)
        comb = comb.at[:t_total, 0:6, :].set(lab_all)
        comb = comb.at[:t_total, 8:8 + num_q, 0:6].set(br_all)
        comb = comb.at[:t_total, 8:8 + num_q, 6].set(dl_all)
        comb = comb.at[:t_total, 16, :].set(jnp.asarray(pos_cols))
        comb = comb.at[:t_total, 17, :].set(jnp.asarray(neg_cols))

        # ---- ONE fused Pallas call: Hungarian costs + per-query focal terms --------
        cost_dev, aux_dev = _run_cost_focal(
            comb, tblk=tblk, steps=steps, nc_pad=nc_pad,
            box_l1_w=self.box_l1_weight, box_giou_w=self.box_giou_weight,
            disc_w=self.disc_weight, gamma=gamma, alpha=alpha, match_ce=self.match_ce)
        fpos = aux_dev[:t_total, :num_q, 0]          # focal(x, y=1), no alpha
        fneg = aux_dev[:t_total, :num_q, 1]          # focal(x, y=0), no alpha

        # ---- ONE blocking D2H of only the solver-visible columns + Hungarian -------
        max_cols = int(max(1, (num_pos + num_neg).max()))
        cost_np = np.asarray(cost_dev[:t_total, :num_q, :max_cols])
        match = np.full((t_total, num_q), MATCH_UNCERTAIN, dtype=np.int64)
        for k in range(t_total):
            # TODO(synk): num_uncertain hard-coded to 0, as in the reference compute_loss.
            match[k] = self._match_from_cost(cost_np[k], num_q, int(num_pos[k]), 0,
                                             int(start_of_target[k]))
        pos_mask = match >= 0
        neg_mask = match == MATCH_NEGATIVE
        cert_mask = match != MATCH_UNCERTAIN

        # ---- matched pairs for the box loss (one Pallas call, batched gathers) -----
        pair_t, pair_q = np.nonzero(pos_mask)
        n_pairs = int(pair_t.shape[0])
        if n_pairs > 0:
            kpad = max(128, _round_up(n_pairs, 128))
            pair_label = (base_of_target[pair_t] + match[pair_t, pair_q]).astype(np.int32)
            pairs_q = br_all[jnp.asarray(pair_t), jnp.asarray(pair_q)]    # (n_pairs, 6)
            pairs_t = bl_all[jnp.asarray(pair_label)]                     # (n_pairs, 6)
            pk = jnp.zeros((16, kpad), jnp.float32)
            pk = pk.at[0:6, :n_pairs].set(pairs_q.T)
            pk = pk.at[8:14, :n_pairs].set(pairs_t.T)
            box_out = matched_box_pair_terms(pk, kpad)         # (8,kpad): row0 l1, row1 giou
            pair_member = np.zeros((batch_size, kpad), np.float32)
            pair_member[sample_of_target[pair_t], np.arange(n_pairs)] = 1.0
            pair_sums = jnp.einsum('bk,rk->br', jnp.asarray(pair_member), box_out[:2, :])
        else:
            pair_sums = jnp.zeros((batch_size, 2), jnp.float32)

        # ---- batched loss assembly: per-target sums -> per-sample via one matmul ----
        posf = jnp.asarray(pos_mask.astype(np.float32))
        negf = jnp.asarray(neg_mask.astype(np.float32))
        certf = jnp.asarray(cert_mask.astype(np.float32))
        if alpha is not None:
            elem = jnp.where(posf > 0, alpha * fpos, (1.0 - alpha) * fneg)
        else:
            elem = jnp.where(posf > 0, fpos, fneg)
        per_t = jnp.stack([jnp.sum(elem * certf, axis=1),
                           jnp.sum(fpos * posf, axis=1),
                           jnp.sum(fneg * negf, axis=1)], axis=-1)         # (T, 3)
        member = np.zeros((batch_size, t_total), np.float32)
        member[sample_of_target, np.arange(t_total)] = 1.0
        per_sample = jnp.asarray(member) @ per_t                            # (B, 3)

        cert_cnt = member @ cert_mask.sum(1).astype(np.float32)
        pos_cnt = member @ pos_mask.sum(1).astype(np.float32)
        neg_cnt = member @ neg_mask.sum(1).astype(np.float32)
        inv_cert = np.where(cert_cnt > 0, 1.0 / np.maximum(cert_cnt, 1.0), 0.0).astype(np.float32)
        inv_pos = np.where(pos_cnt > 0, 1.0 / np.maximum(pos_cnt, 1.0), 0.0).astype(np.float32)
        inv_neg = np.where(neg_cnt > 0, 1.0 / np.maximum(neg_cnt, 1.0), 0.0).astype(np.float32)
        has_pos = (pos_cnt > 0).astype(np.float32)

        disc_mean = per_sample[:, 0] * jnp.asarray(inv_cert)
        disc_pos_mean = per_sample[:, 1] * jnp.asarray(inv_pos)   # log only (no_grad in ref)
        disc_neg_mean = per_sample[:, 2] * jnp.asarray(inv_neg)   # log only
        l1_mean = pair_sums[:, 0] * jnp.asarray(inv_pos)
        giou_loss = 1.0 - pair_sums[:, 1] * jnp.asarray(inv_pos)

        loss_vec = (self.disc_weight * disc_mean
                    + jnp.asarray(has_pos) * (self.box_l1_weight * l1_mean
                                              + self.box_giou_weight * giou_loss))
        loss = jnp.sum(loss_vec) / float(batch_size)

        def _subset_mean(vec, sel):
            cnt = int(sel.sum())
            if cnt == 0:
                return None
            return jnp.sum(vec * jnp.asarray(sel.astype(np.float32))) / float(cnt)

        log_dict = {}
        m = _subset_mean(disc_mean, num_targets > 0)
        if m is not None:
            log_dict[f'instance-disc-{focal_key}'] = m
        m = _subset_mean(disc_pos_mean, pos_cnt > 0)
        if m is not None:
            log_dict[f'instance-disc-pos-{focal_key}'] = m
        m = _subset_mean(l1_mean, pos_cnt > 0)
        if m is not None:
            log_dict['instance-box-l1'] = m
        m = _subset_mean(giou_loss, pos_cnt > 0)
        if m is not None:
            log_dict['instance-box-giou'] = m
        m = _subset_mean(disc_neg_mean, neg_cnt > 0)
        if m is not None:
            log_dict[f'instance-disc-neg-{focal_key}'] = m
        # TODO(synk): positive/negative mask losses omitted (mask_loss=None, masks_label=None config).
        return loss, log_dict

    __call__ = forward


# ----------------------------------------------------------------------------
# Demo
# ----------------------------------------------------------------------------
def _rand_boxes(key, n):
    kc, ks = jax.random.split(key)
    centers = jax.random.uniform(kc, (n, 3), minval=0.25, maxval=0.75)
    sizes = jax.random.uniform(ks, (n, 3), minval=0.05, maxval=0.30)
    return jnp.concatenate([centers, sizes], axis=-1).astype(jnp.float32)


if __name__ == "__main__":
    key = jax.random.PRNGKey(0)
    Qp1 = 8            # queries per target (incl. leading semantic query)
    Q = Qp1 - 1        # instance queries
    D, H, W = 4, 8, 8  # (unused mask-logit spatial size, API compatibility only)

    loss_mod = InstanceSamLoss(
        mask_loss=None, use_neg_mask=False,
        box_l1_weight=5.0, box_giou_weight=2.0,
        disc_weight=2.0, disc_focal_gamma=2.0, disc_focal_alpha=0.25,
        match_ce=True)

    masks_logits, masks_low, boxes_reg, disc_logit = [], [], [], []
    masks_label, boxes_label, index_offsets = [], [], []

    # sample 0: 2 targets, 7 label boxes (3 + 4); sample 1: 1 target, 5 label boxes
    sample_cfg = [
        (2, np.array([[0, 3], [3, 7]], np.int64)),
        (1, np.array([[0, 5]], np.int64)),
    ]
    for s, (T, offs) in enumerate(sample_cfg):
        key, k1, k2, k3, k4, k5 = jax.random.split(key, 6)
        masks_logits.append(jax.random.normal(k1, (T, Qp1, D, H, W), jnp.float32))
        masks_low.append(jax.random.normal(k2, (T, Qp1, D // 2, H // 2, W // 2), jnp.float32))
        boxes_reg.append(
            jnp.stack([_rand_boxes(jax.random.fold_in(k3, t), Qp1) for t in range(T)]))
        disc_logit.append(1.5 * jax.random.normal(k4, (T, Q), jnp.float32))
        masks_label.append(None)
        n_labels = int(offs[-1, 1])
        boxes_label.append(_rand_boxes(k5, n_labels))
        index_offsets.append(offs)        # host-resident (numpy) offsets: no device sync

    loss, log_dict = loss_mod(masks_logits, masks_low, boxes_reg, disc_logit,
                              masks_label, boxes_label, index_offsets)
    loss = jax.block_until_ready(loss)
    for v in log_dict.values():
        jax.block_until_ready(v)
    print("KERNEL_OK")
</pallas_src>

<mosaic_0001>
module attributes {stable_mosaic.version = 11 : i64} {
  func.func @_cost_focal_kernel(%arg0: i32, %arg1: memref<2x24x128xf32, #tpu.memory_space<vmem>>, %arg2: memref<2x8x128xf32, #tpu.memory_space<vmem>>, %arg3: memref<2x8x128xf32, #tpu.memory_space<vmem>>) attributes {dimension_semantics = [#tpu.dimension_semantics<parallel>], iteration_bounds = array<i64: 2>, scalar_prefetch = 0 : i64, scratch_operands = 0 : i64, tpu.core_type = #tpu.core_type<tc>, window_params = [{transform_indices = @transform_0, window_bounds = array<i64: 2, 24, 128>}, {transform_indices = @transform_1, window_bounds = array<i64: 2, 8, 128>}, {transform_indices = @transform_2, window_bounds = array<i64: 2, 8, 128>}]} {
    %c0 = arith.constant 0 : index
    %c0_0 = arith.constant 0 : index
    %c0_1 = arith.constant 0 : index
    %0 = vector.load %arg1[%c0, %c0_0, %c0_1] : memref<2x24x128xf32, #tpu.memory_space<vmem>>, vector<1x24x128xf32>
    %1 = vector.shape_cast %0 : vector<1x24x128xf32> to vector<24x128xf32>
    %2 = vector.extract_strided_slice %1 {offsets = [0, 0], sizes = [8, 128], strides = [1, 1]} : vector<24x128xf32> to vector<8x128xf32>
    %3 = vector.extract_strided_slice %1 {offsets = [8, 0], sizes = [8, 128], strides = [1, 1]} : vector<24x128xf32> to vector<8x128xf32>
    %4 = vector.extract_strided_slice %1 {offsets = [16, 0], sizes = [8, 128], strides = [1, 1]} : vector<24x128xf32> to vector<8x128xf32>
    %5 = vector.extract_strided_slice %3 {offsets = [0, 6], sizes = [8, 1], strides = [1, 1]} : vector<8x128xf32> to vector<8x1xf32>
    %6 = math.absf %5 : vector<8x1xf32>
    %cst = arith.constant 0.000000e+00 : f32
    %7 = vector.broadcast %cst : f32 to vector<8x1xf32>
    %8 = arith.subf %7, %6 : vector<8x1xf32>
    %9 = math.exp %8 : vector<8x1xf32>
    %cst_2 = arith.constant 1.000000e+00 : f32
    %10 = vector.broadcast %cst_2 : f32 to vector<8x1xf32>
    %11 = arith.addf %10, %9 : vector<8x1xf32>
    %cst_3 = arith.constant 1.000000e+00 : f32
    %12 = vector.broadcast %cst_3 : f32 to vector<8x1xf32>
    %13 = arith.divf %12, %11 : vector<8x1xf32>
    %cst_4 = arith.constant 0.000000e+00 : f32
    %14 = vector.broadcast %cst_4 : f32 to vector<8x1xf32>
    %15 = arith.cmpf oge, %5, %14 : vector<8x1xf32>
    %16 = arith.mulf %9, %13 : vector<8x1xf32>
    %17 = arith.select %15, %13, %16 : vector<8x1xi1>, vector<8x1xf32>
    %18 = math.log1p %9 : vector<8x1xf32>
    %cst_5 = arith.constant 0.000000e+00 : f32
    %19 = vector.broadcast %cst_5 : f32 to vector<8x1xf32>
    %20 = arith.maximumf %5, %19 : vector<8x1xf32>
    %21 = arith.subf %20, %5 : vector<8x1xf32>
    %22 = arith.addf %21, %18 : vector<8x1xf32>
    %23 = arith.addf %20, %18 : vector<8x1xf32>
    %cst_6 = arith.constant 1.000000e+00 : f32
    %24 = vector.broadcast %cst_6 : f32 to vector<8x1xf32>
    %25 = arith.subf %24, %17 : vector<8x1xf32>
    %26 = arith.mulf %25, %25 : vector<8x1xf32>
    %27 = arith.mulf %22, %26 : vector<8x1xf32>
    %28 = arith.mulf %17, %17 : vector<8x1xf32>
    %29 = arith.mulf %23, %28 : vector<8x1xf32>
    %cst_7 = arith.constant 1.000000e+00 : f32
    %30 = vector.broadcast %cst_7 : f32 to vector<8x1xf32>
    %31 = arith.subf %30, %17 : vector<8x1xf32>
    %cst_8 = arith.constant 2.000000e+00 : f32
    %32 = vector.broadcast %cst_8 : f32 to vector<8x1xf32>
    %33 = arith.mulf %32, %31 : vector<8x1xf32>
    %cst_9 = arith.constant 2.000000e+00 : f32
    %34 = vector.broadcast %cst_9 : f32 to vector<8x1xf32>
    %35 = arith.mulf %34, %17 : vector<8x1xf32>
    %cst_10 = arith.constant 0.000000e+00 : f32
    %36 = vector.broadcast %cst_10 : f32 to vector<8x128xf32>
    %cst_11 = arith.constant 1.000000e+00 : f32
    %37 = vector.broadcast %cst_11 : f32 to vector<8x128xf32>
    %cst_12 = arith.constant 1.000000e+00 : f32
    %38 = vector.broadcast %cst_12 : f32 to vector<8x128xf32>
    %cst_13 = arith.constant 1.000000e+00 : f32
    %39 = vector.broadcast %cst_13 : f32 to vector<8x1xf32>
    %cst_14 = arith.constant 1.000000e+00 : f32
    %40 = vector.broadcast %cst_14 : f32 to vector<1x128xf32>
    %41 = vector.extract_strided_slice %3 {offsets = [0, 0], sizes = [8, 1], strides = [1, 1]} : vector<8x128xf32> to vector<8x1xf32>
    %42 = vector.extract_strided_slice %3 {offsets = [0, 3], sizes = [8, 1], strides = [1, 1]} : vector<8x128xf32> to vector<8x1xf32>
    %43 = vector.extract_strided_slice %2 {offsets = [0, 0], sizes = [1, 128], strides = [1, 1]} : vector<8x128xf32> to vector<1x128xf32>
    %44 = vector.extract_strided_slice %2 {offsets = [3, 0], sizes = [1, 128], strides = [1, 1]} : vector<8x128xf32> to vector<1x128xf32>
    %45 = vector.broadcast %41 : vector<8x1xf32> to vector<8x128xf32>
    %46 = vector.broadcast %43 : vector<1x128xf32> to vector<8x128xf32>
    %47 = arith.subf %45, %46 : vector<8x128xf32>
    %48 = math.absf %47 : vector<8x128xf32>
    %49 = arith.addf %36, %48 : vector<8x128xf32>
    %50 = vector.broadcast %42 : vector<8x1xf32> to vector<8x128xf32>
    %51 = vector.broadcast %44 : vector<1x128xf32> to vector<8x128xf32>
    %52 = arith.subf %50, %51 : vector<8x128xf32>
    %53 = math.absf %52 : vector<8x128xf32>
    %54 = arith.addf %49, %53 : vector<8x128xf32>
    %cst_15 = arith.constant 5.000000e-01 : f32
    %55 = vector.broadcast %cst_15 : f32 to vector<8x1xf32>
    %56 = arith.mulf %55, %42 : vector<8x1xf32>
    %57 = arith.subf %41, %56 : vector<8x1xf32>
    %cst_16 = arith.constant 5.000000e-01 : f32
    %58 = vector.broadcast %cst_16 : f32 to vector<8x1xf32>
    %59 = arith.mulf %58, %42 : vector<8x1xf32>
    %60 = arith.addf %41, %59 : vector<8x1xf32>
    %cst_17 = arith.constant 5.000000e-01 : f32
    %61 = vector.broadcast %cst_17 : f32 to vector<1x128xf32>
    %62 = arith.mulf %61, %44 : vector<1x128xf32>
    %63 = arith.subf %43, %62 : vector<1x128xf32>
    %cst_18 = arith.constant 5.000000e-01 : f32
    %64 = vector.broadcast %cst_18 : f32 to vector<1x128xf32>
    %65 = arith.mulf %64, %44 : vector<1x128xf32>
    %66 = arith.addf %43, %65 : vector<1x128xf32>
    %67 = vector.broadcast %60 : vector<8x1xf32> to vector<8x128xf32>
    %68 = vector.broadcast %66 : vector<1x128xf32> to vector<8x128xf32>
    %69 = arith.minimumf %67, %68 : vector<8x128xf32>
    %70 = vector.broadcast %57 : vector<8x1xf32> to vector<8x128xf32>
    %71 = vector.broadcast %63 : vector<1x128xf32> to vector<8x128xf32>
    %72 = arith.maximumf %70, %71 : vector<8x128xf32>
    %73 = arith.subf %69, %72 : vector<8x128xf32>
    %cst_19 = arith.constant 0.000000e+00 : f32
    %74 = vector.broadcast %cst_19 : f32 to vector<8x128xf32>
    %75 = arith.maximumf %73, %74 : vector<8x128xf32>
    %76 = arith.mulf %37, %75 : vector<8x128xf32>
    %77 = vector.broadcast %60 : vector<8x1xf32> to vector<8x128xf32>
    %78 = vector.broadcast %66 : vector<1x128xf32> to vector<8x128xf32>
    %79 = arith.maximumf %77, %78 : vector<8x128xf32>
    %80 = vector.broadcast %57 : vector<8x1xf32> to vector<8x128xf32>
    %81 = vector.broadcast %63 : vector<1x128xf32> to vector<8x128xf32>
    %82 = arith.minimumf %80, %81 : vector<8x128xf32>
    %83 = arith.subf %79, %82 : vector<8x128xf32>
    %cst_20 = arith.constant 0.000000e+00 : f32
    %84 = vector.broadcast %cst_20 : f32 to vector<8x128xf32>
    %85 = arith.maximumf %83, %84 : vector<8x128xf32>
    %86 = arith.mulf %38, %85 : vector<8x128xf32>
    %87 = arith.subf %60, %57 : vector<8x1xf32>
    %88 = arith.mulf %39, %87 : vector<8x1xf32>
    %89 = arith.subf %66, %63 : vector<1x128xf32>
    %90 = arith.mulf %40, %89 : vector<1x128xf32>
    %91 = vector.extract_strided_slice %3 {offsets = [0, 1], sizes = [8, 1], strides = [1, 1]} : vector<8x128xf32> to vector<8x1xf32>
    %92 = vector.extract_strided_slice %3 {offsets = [0, 4], sizes = [8, 1], strides = [1, 1]} : vector<8x128xf32> to vector<8x1xf32>
    %93 = vector.extract_strided_slice %2 {offsets = [1, 0], sizes = [1, 128], strides = [1, 1]} : vector<8x128xf32> to vector<1x128xf32>
    %94 = vector.extract_strided_slice %2 {offsets = [4, 0], sizes = [1, 128], strides = [1, 1]} : vector<8x128xf32> to vector<1x128xf32>
    %95 = vector.broadcast %91 : vector<8x1xf32> to vector<8x128xf32>
    %96 = vector.broadcast %93 : vector<1x128xf32> to vector<8x128xf32>
    %97 = arith.subf %95, %96 : vector<8x128xf32>
    %98 = math.absf %97 : vector<8x128xf32>
    %99 = arith.addf %54, %98 : vector<8x128xf32>
    %100 = vector.broadcast %92 : vector<8x1xf32> to vector<8x128xf32>
    %101 = vector.broadcast %94 : vector<1x128xf32> to vector<8x128xf32>
    %102 = arith.subf %100, %101 : vector<8x128xf32>
    %103 = math.absf %102 : vector<8x128xf32>
    %104 = arith.addf %99, %103 : vector<8x128xf32>
    %cst_21 = arith.constant 5.000000e-01 : f32
    %105 = vector.broadcast %cst_21 : f32 to vector<8x1xf32>
    %106 = arith.mulf %105, %92 : vector<8x1xf32>
    %107 = arith.subf %91, %106 : vector<8x1xf32>
    %cst_22 = arith.constant 5.000000e-01 : f32
    %108 = vector.broadcast %cst_22 : f32 to vector<8x1xf32>
    %109 = arith.mulf %108, %92 : vector<8x1xf32>
    %110 = arith.addf %91, %109 : vector<8x1xf32>
    %cst_23 = arith.constant 5.000000e-01 : f32
    %111 = vector.broadcast %cst_23 : f32 to vector<1x128xf32>
    %112 = arith.mulf %111, %94 : vector<1x128xf32>
    %113 = arith.subf %93, %112 : vector<1x128xf32>
    %cst_24 = arith.constant 5.000000e-01 : f32
    %114 = vector.broadcast %cst_24 : f32 to vector<1x128xf32>
    %115 = arith.mulf %114, %94 : vector<1x128xf32>
    %116 = arith.addf %93, %115 : vector<1x128xf32>
    %117 = vector.broadcast %110 : vector<8x1xf32> to vector<8x128xf32>
    %118 = vector.broadcast %116 : vector<1x128xf32> to vector<8x128xf32>
    %119 = arith.minimumf %117, %118 : vector<8x128xf32>
    %120 = vector.broadcast %107 : vector<8x1xf32> to vector<8x128xf32>
    %121 = vector.broadcast %113 : vector<1x128xf32> to vector<8x128xf32>
    %122 = arith.maximumf %120, %121 : vector<8x128xf32>
    %123 = arith.subf %119, %122 : vector<8x128xf32>
    %cst_25 = arith.constant 0.000000e+00 : f32
    %124 = vector.broadcast %cst_25 : f32 to vector<8x128xf32>
    %125 = arith.maximumf %123, %124 : vector<8x128xf32>
    %126 = arith.mulf %76, %125 : vector<8x128xf32>
    %127 = vector.broadcast %110 : vector<8x1xf32> to vector<8x128xf32>
    %128 = vector.broadcast %116 : vector<1x128xf32> to vector<8x128xf32>
    %129 = arith.maximumf %127, %128 : vector<8x128xf32>
    %130 = vector.broadcast %107 : vector<8x1xf32> to vector<8x128xf32>
    %131 = vector.broadcast %113 : vector<1x128xf32> to vector<8x128xf32>
    %132 = arith.minimumf %130, %131 : vector<8x128xf32>
    %133 = arith.subf %129, %132 : vector<8x128xf32>
    %cst_26 = arith.constant 0.000000e+00 : f32
    %134 = vector.broadcast %cst_26 : f32 to vector<8x128xf32>
    %135 = arith.maximumf %133, %134 : vector<8x128xf32>
    %136 = arith.mulf %86, %135 : vector<8x128xf32>
    %137 = arith.subf %110, %107 : vector<8x1xf32>
    %138 = arith.mulf %88, %137 : vector<8x1xf32>
    %139 = arith.subf %116, %113 : vector<1x128xf32>
    %140 = arith.mulf %90, %139 : vector<1x128xf32>
    %141 = vector.extract_strided_slice %3 {offsets = [0, 2], sizes = [8, 1], strides = [1, 1]} : vector<8x128xf32> to vector<8x1xf32>
    %142 = vector.extract_strided_slice %3 {offsets = [0, 5], sizes = [8, 1], strides = [1, 1]} : vector<8x128xf32> to vector<8x1xf32>
    %143 = vector.extract_strided_slice %2 {offsets = [2, 0], sizes = [1, 128], strides = [1, 1]} : vector<8x128xf32> to vector<1x128xf32>
    %144 = vector.extract_strided_slice %2 {offsets = [5, 0], sizes = [1, 128], strides = [1, 1]} : vector<8x128xf32> to vector<1x128xf32>
    %145 = vector.broadcast %141 : vector<8x1xf32> to vector<8x128xf32>
    %146 = vector.broadcast %143 : vector<1x128xf32> to vector<8x128xf32>
    %147 = arith.subf %145, %146 : vector<8x128xf32>
    %148 = math.absf %147 : vector<8x128xf32>
    %149 = arith.addf %104, %148 : vector<8x128xf32>
    %150 = vector.broadcast %142 : vector<8x1xf32> to vector<8x128xf32>
    %151 = vector.broadcast %144 : vector<1x128xf32> to vector<8x128xf32>
    %152 = arith.subf %150, %151 : vector<8x128xf32>
    %153 = math.absf %152 : vector<8x128xf32>
    %154 = arith.addf %149, %153 : vector<8x128xf32>
    %cst_27 = arith.constant 5.000000e-01 : f32
    %155 = vector.broadcast %cst_27 : f32 to vector<8x1xf32>
    %156 = arith.mulf %155, %142 : vector<8x1xf32>
    %157 = arith.subf %141, %156 : vector<8x1xf32>
    %cst_28 = arith.constant 5.000000e-01 : f32
    %158 = vector.broadcast %cst_28 : f32 to vector<8x1xf32>
    %159 = arith.mulf %158, %142 : vector<8x1xf32>
    %160 = arith.addf %141, %159 : vector<8x1xf32>
    %cst_29 = arith.constant 5.000000e-01 : f32
    %161 = vector.broadcast %cst_29 : f32 to vector<1x128xf32>
    %162 = arith.mulf %161, %144 : vector<1x128xf32>
    %163 = arith.subf %143, %162 : vector<1x128xf32>
    %cst_30 = arith.constant 5.000000e-01 : f32
    %164 = vector.broadcast %cst_30 : f32 to vector<1x128xf32>
    %165 = arith.mulf %164, %144 : vector<1x128xf32>
    %166 = arith.addf %143, %165 : vector<1x128xf32>
    %167 = vector.broadcast %160 : vector<8x1xf32> to vector<8x128xf32>
    %168 = vector.broadcast %166 : vector<1x128xf32> to vector<8x128xf32>
    %169 = arith.minimumf %167, %168 : vector<8x128xf32>
    %170 = vector.broadcast %157 : vector<8x1xf32> to vector<8x128xf32>
    %171 = vector.broadcast %163 : vector<1x128xf32> to vector<8x128xf32>
    %172 = arith.maximumf %170, %171 : vector<8x128xf32>
    %173 = arith.subf %169, %172 : vector<8x128xf32>
    %cst_31 = arith.constant 0.000000e+00 : f32
    %174 = vector.broadcast %cst_31 : f32 to vector<8x128xf32>
    %175 = arith.maximumf %173, %174 : vector<8x128xf32>
    %176 = arith.mulf %126, %175 : vector<8x128xf32>
    %177 = vector.broadcast %160 : vector<8x1xf32> to vector<8x128xf32>
    %178 = vector.broadcast %166 : vector<1x128xf32> to vector<8x128xf32>
    %179 = arith.maximumf %177, %178 : vector<8x128xf32>
    %180 = vector.broadcast %157 : vector<8x1xf32> to vector<8x128xf32>
    %181 = vector.broadcast %163 : vector<1x128xf32> to vector<8x128xf32>
    %182 = arith.minimumf %180, %181 : vector<8x128xf32>
    %183 = arith.subf %179, %182 : vector<8x128xf32>
    %cst_32 = arith.constant 0.000000e+00 : f32
    %184 = vector.broadcast %cst_32 : f32 to vector<8x128xf32>
    %185 = arith.maximumf %183, %184 : vector<8x128xf32>
    %186 = arith.mulf %136, %185 : vector<8x128xf32>
    %187 = arith.subf %160, %157 : vector<8x1xf32>
    %188 = arith.mulf %138, %187 : vector<8x1xf32>
    %189 = arith.subf %166, %163 : vector<1x128xf32>
    %190 = arith.mulf %140, %189 : vector<1x128xf32>
    %cst_33 = arith.constant 0.166666672 : f32
    %191 = vector.broadcast %cst_33 : f32 to vector<8x128xf32>
    %192 = arith.mulf %154, %191 : vector<8x128xf32>
    %193 = vector.broadcast %188 : vector<8x1xf32> to vector<8x128xf32>
    %194 = vector.broadcast %190 : vector<1x128xf32> to vector<8x128xf32>
    %195 = arith.addf %193, %194 : vector<8x128xf32>
    %196 = arith.subf %195, %176 : vector<8x128xf32>
    %cst_34 = arith.constant 1.1920929E-7 : f32
    %197 = vector.broadcast %cst_34 : f32 to vector<8x128xf32>
    %198 = arith.addf %196, %197 : vector<8x128xf32>
    %199 = arith.divf %176, %198 : vector<8x128xf32>
    %200 = arith.subf %186, %196 : vector<8x128xf32>
    %cst_35 = arith.constant 1.1920929E-7 : f32
    %201 = vector.broadcast %cst_35 : f32 to vector<8x128xf32>
    %202 = arith.addf %186, %201 : vector<8x128xf32>
    %203 = arith.divf %200, %202 : vector<8x128xf32>
    %204 = arith.subf %199, %203 : vector<8x128xf32>
    %cst_36 = arith.constant 5.000000e+00 : f32
    %205 = vector.broadcast %cst_36 : f32 to vector<8x128xf32>
    %206 = arith.mulf %205, %192 : vector<8x128xf32>
    %cst_37 = arith.constant 1.000000e+00 : f32
    %207 = vector.broadcast %cst_37 : f32 to vector<8x128xf32>
    %208 = arith.subf %207, %204 : vector<8x128xf32>
    %cst_38 = arith.constant 2.000000e+00 : f32
    %209 = vector.broadcast %cst_38 : f32 to vector<8x128xf32>
    %210 = arith.mulf %209, %208 : vector<8x128xf32>
    %211 = arith.addf %206, %210 : vector<8x128xf32>
    %212 = vector.extract_strided_slice %4 {offsets = [0, 0], sizes = [1, 128], strides = [1, 1]} : vector<8x128xf32> to vector<1x128xf32>
    %213 = vector.extract_strided_slice %4 {offsets = [1, 0], sizes = [1, 128], strides = [1, 1]} : vector<8x128xf32> to vector<1x128xf32>
    %214 = vector.broadcast %33 : vector<8x1xf32> to vector<8x128xf32>
    %215 = arith.addf %214, %211 : vector<8x128xf32>
    %216 = vector.broadcast %212 : vector<1x128xf32> to vector<8x128xf32>
    %217 = arith.mulf %216, %215 : vector<8x128xf32>
    %218 = vector.broadcast %213 : vector<1x128xf32> to vector<8x128xf32>
    %219 = vector.broadcast %35 : vector<8x1xf32> to vector<8x128xf32>
    %220 = arith.mulf %218, %219 : vector<8x128xf32>
    %221 = arith.addf %217, %220 : vector<8x128xf32>
    %c0_39 = arith.constant 0 : index
    %c0_40 = arith.constant 0 : index
    %c0_41 = arith.constant 0 : index
    %222 = vector.load %arg2[%c0_39, %c0_40, %c0_41] : memref<2x8x128xf32, #tpu.memory_space<vmem>>, vector<1x8x128xf32>
    %223 = vector.shape_cast %222 : vector<1x8x128xf32> to vector<8x128xf32>
    %224 = vector.shape_cast %221 : vector<8x128xf32> to vector<1x8x128xf32>
    tpu.vector_store %arg2[%c0_39, %c0_40, %c0_41], %224 {strides = array<i32>} : memref<2x8x128xf32, #tpu.memory_space<vmem>>, vector<1x8x128xf32>,
    %225 = tpu.iota {dimensions = array<i32: 1>} : vector<8x128xi32>
    %c0_i32 = arith.constant 0 : i32
    %226 = vector.broadcast %c0_i32 : i32 to vector<8x128xi32>
    %227 = arith.cmpi eq, %225, %226 : vector<8x128xi32>
    %c1_i32 = arith.constant 1 : i32
    %228 = vector.broadcast %c1_i32 : i32 to vector<8x128xi32>
    %229 = arith.cmpi eq, %225, %228 : vector<8x128xi32>
    %cst_42 = arith.constant 0.000000e+00 : f32
    %230 = vector.shape_cast %29 : vector<8x1xf32> to vector<8x1xf32>
    %231 = vector.broadcast %230 : vector<8x1xf32> to vector<8x128xf32>
    %232 = vector.broadcast %cst_42 : f32 to vector<8x128xf32>
    %233 = arith.select %229, %231, %232 : vector<8x128xi1>, vector<8x128xf32>
    %234 = vector.shape_cast %27 : vector<8x1xf32> to vector<8x1xf32>
    %235 = vector.broadcast %234 : vector<8x1xf32> to vector<8x128xf32>
    %236 = arith.select %227, %235, %233 : vector<8x128xi1>, vector<8x128xf32>
    %c0_43 = arith.constant 0 : index
    %c0_44 = arith.constant 0 : index
    %c0_45 = arith.constant 0 : index
    %237 = vector.load %arg3[%c0_43, %c0_44, %c0_45] : memref<2x8x128xf32, #tpu.memory_space<vmem>>, vector<1x8x128xf32>
    %238 = vector.shape_cast %237 : vector<1x8x128xf32> to vector<8x128xf32>
    %239 = vector.shape_cast %236 : vector<8x128xf32> to vector<1x8x128xf32>
    tpu.vector_store %arg3[%c0_43, %c0_44, %c0_45], %239 {strides = array<i32>} : memref<2x8x128xf32, #tpu.memory_space<vmem>>, vector<1x8x128xf32>,
    %c1 = arith.constant 1 : index
    %c0_46 = arith.constant 0 : index
    %c0_47 = arith.constant 0 : index
    %240 = vector.load %arg1[%c1, %c0_46, %c0_47] : memref<2x24x128xf32, #tpu.memory_space<vmem>>, vector<1x24x128xf32>
    %241 = vector.shape_cast %240 : vector<1x24x128xf32> to vector<24x128xf32>
    %242 = vector.extract_strided_slice %241 {offsets = [0, 0], sizes = [8, 128], strides = [1, 1]} : vector<24x128xf32> to vector<8x128xf32>
    %243 = vector.extract_strided_slice %241 {offsets = [8, 0], sizes = [8, 128], strides = [1, 1]} : vector<24x128xf32> to vector<8x128xf32>
    %244 = vector.extract_strided_slice %241 {offsets = [16, 0], sizes = [8, 128], strides = [1, 1]} : vector<24x128xf32> to vector<8x128xf32>
    %245 = vector.extract_strided_slice %243 {offsets = [0, 6], sizes = [8, 1], strides = [1, 1]} : vector<8x128xf32> to vector<8x1xf32>
    %246 = math.absf %245 : vector<8x1xf32>
    %cst_48 = arith.constant 0.000000e+00 : f32
    %247 = vector.broadcast %cst_48 : f32 to vector<8x1xf32>
    %248 = arith.subf %247, %246 : vector<8x1xf32>
    %249 = math.exp %248 : vector<8x1xf32>
    %cst_49 = arith.constant 1.000000e+00 : f32
    %250 = vector.broadcast %cst_49 : f32 to vector<8x1xf32>
    %251 = arith.addf %250, %249 : vector<8x1xf32>
    %cst_50 = arith.constant 1.000000e+00 : f32
    %252 = vector.broadcast %cst_50 : f32 to vector<8x1xf32>
    %253 = arith.divf %252, %251 : vector<8x1xf32>
    %cst_51 = arith.constant 0.000000e+00 : f32
    %254 = vector.broadcast %cst_51 : f32 to vector<8x1xf32>
    %255 = arith.cmpf oge, %245, %254 : vector<8x1xf32>
    %256 = arith.mulf %249, %253 : vector<8x1xf32>
    %257 = arith.select %255, %253, %256 : vector<8x1xi1>, vector<8x1xf32>
    %258 = math.log1p %249 : vector<8x1xf32>
    %cst_52 = arith.constant 0.000000e+00 : f32
    %259 = vector.broadcast %cst_52 : f32 to vector<8x1xf32>
    %260 = arith.maximumf %245, %259 : vector<8x1xf32>
    %261 = arith.subf %260, %245 : vector<8x1xf32>
    %262 = arith.addf %261, %258 : vector<8x1xf32>
    %263 = arith.addf %260, %258 : vector<8x1xf32>
    %cst_53 = arith.constant 1.000000e+00 : f32
    %264 = vector.broadcast %cst_53 : f32 to vector<8x1xf32>
    %265 = arith.subf %264, %257 : vector<8x1xf32>
    %266 = arith.mulf %265, %265 : vector<8x1xf32>
    %267 = arith.mulf %262, %266 : vector<8x1xf32>
    %268 = arith.mulf %257, %257 : vector<8x1xf32>
    %269 = arith.mulf %263, %268 : vector<8x1xf32>
    %cst_54 = arith.constant 1.000000e+00 : f32
    %270 = vector.broadcast %cst_54 : f32 to vector<8x1xf32>
    %271 = arith.subf %270, %257 : vector<8x1xf32>
    %cst_55 = arith.constant 2.000000e+00 : f32
    %272 = vector.broadcast %cst_55 : f32 to vector<8x1xf32>
    %273 = arith.mulf %272, %271 : vector<8x1xf32>
    %cst_56 = arith.constant 2.000000e+00 : f32
    %274 = vector.broadcast %cst_56 : f32 to vector<8x1xf32>
    %275 = arith.mulf %274, %257 : vector<8x1xf32>
    %cst_57 = arith.constant 0.000000e+00 : f32
    %276 = vector.broadcast %cst_57 : f32 to vector<8x128xf32>
    %cst_58 = arith.constant 1.000000e+00 : f32
    %277 = vector.broadcast %cst_58 : f32 to vector<8x128xf32>
    %cst_59 = arith.constant 1.000000e+00 : f32
    %278 = vector.broadcast %cst_59 : f32 to vector<8x128xf32>
    %cst_60 = arith.constant 1.000000e+00 : f32
    %279 = vector.broadcast %cst_60 : f32 to vector<8x1xf32>
    %cst_61 = arith.constant 1.000000e+00 : f32
    %280 = vector.broadcast %cst_61 : f32 to vector<1x128xf32>
    %281 = vector.extract_strided_slice %243 {offsets = [0, 0], sizes = [8, 1], strides = [1, 1]} : vector<8x128xf32> to vector<8x1xf32>
    %282 = vector.extract_strided_slice %243 {offsets = [0, 3], sizes = [8, 1], strides = [1, 1]} : vector<8x128xf32> to vector<8x1xf32>
    %283 = vector.extract_strided_slice %242 {offsets = [0, 0], sizes = [1, 128], strides = [1, 1]} : vector<8x128xf32> to vector<1x128xf32>
    %284 = vector.extract_strided_slice %242 {offsets = [3, 0], sizes = [1, 128], strides = [1, 1]} : vector<8x128xf32> to vector<1x128xf32>
    %285 = vector.broadcast %281 : vector<8x1xf32> to vector<8x128xf32>
    %286 = vector.broadcast %283 : vector<1x128xf32> to vector<8x128xf32>
    %287 = arith.subf %285, %286 : vector<8x128xf32>
    %288 = math.absf %287 : vector<8x128xf32>
    %289 = arith.addf %276, %288 : vector<8x128xf32>
    %290 = vector.broadcast %282 : vector<8x1xf32> to vector<8x128xf32>
    %291 = vector.broadcast %284 : vector<1x128xf32> to vector<8x128xf32>
    %292 = arith.subf %290, %291 : vector<8x128xf32>
    %293 = math.absf %292 : vector<8x128xf32>
    %294 = arith.addf %289, %293 : vector<8x128xf32>
    %cst_62 = arith.constant 5.000000e-01 : f32
    %295 = vector.broadcast %cst_62 : f32 to vector<8x1xf32>
    %296 = arith.mulf %295, %282 : vector<8x1xf32>
    %297 = arith.subf %281, %296 : vector<8x1xf32>
    %cst_63 = arith.constant 5.000000e-01 : f32
    %298 = vector.broadcast %cst_63 : f32 to vector<8x1xf32>
    %299 = arith.mulf %298, %282 : vector<8x1xf32>
    %300 = arith.addf %281, %299 : vector<8x1xf32>
    %cst_64 = arith.constant 5.000000e-01 : f32
    %301 = vector.broadcast %cst_64 : f32 to vector<1x128xf32>
    %302 = arith.mulf %301, %284 : vector<1x128xf32>
    %303 = arith.subf %283, %302 : vector<1x128xf32>
    %cst_65 = arith.constant 5.000000e-01 : f32
    %304 = vector.broadcast %cst_65 : f32 to vector<1x128xf32>
    %305 = arith.mulf %304, %284 : vector<1x128xf32>
    %306 = arith.addf %283, %305 : vector<1x128xf32>
    %307 = vector.broadcast %300 : vector<8x1xf32> to vector<8x128xf32>
    %308 = vector.broadcast %306 : vector<1x128xf32> to vector<8x128xf32>
    %309 = arith.minimumf %307, %308 : vector<8x128xf32>
    %310 = vector.broadcast %297 : vector<8x1xf32> to vector<8x128xf32>
    %311 = vector.broadcast %303 : vector<1x128xf32> to vector<8x128xf32>
    %312 = arith.maximumf %310, %311 : vector<8x128xf32>
    %313 = arith.subf %309, %312 : vector<8x128xf32>
    %cst_66 = arith.constant 0.000000e+00 : f32
    %314 = vector.broadcast %cst_66 : f32 to vector<8x128xf32>
    %315 = arith.maximumf %313, %314 : vector<8x128xf32>
    %316 = arith.mulf %277, %315 : vector<8x128xf32>
    %317 = vector.broadcast %300 : vector<8x1xf32> to vector<8x128xf32>
    %318 = vector.broadcast %306 : vector<1x128xf32> to vector<8x128xf32>
    %319 = arith.maximumf %317, %318 : vector<8x128xf32>
    %320 = vector.broadcast %297 : vector<8x1xf32> to vector<8x128xf32>
    %321 = vector.broadcast %303 : vector<1x128xf32> to vector<8x128xf32>
    %322 = arith.minimumf %320, %321 : vector<8x128xf32>
    %323 = arith.subf %319, %322 : vector<8x128xf32>
    %cst_67 = arith.constant 0.000000e+00 : f32
    %324 = vector.broadcast %cst_67 : f32 to vector<8x128xf32>
    %325 = arith.maximumf %323, %324 : vector<8x128xf32>
    %326 = arith.mulf %278, %325 : vector<8x128xf32>
    %327 = arith.subf %300, %297 : vector<8x1xf32>
    %328 = arith.mulf %279, %327 : vector<8x1xf32>
    %329 = arith.subf %306, %303 : vector<1x128xf32>
    %330 = arith.mulf %280, %329 : vector<1x128xf32>
    %331 = vector.extract_strided_slice %243 {offsets = [0, 1], sizes = [8, 1], strides = [1, 1]} : vector<8x128xf32> to vector<8x1xf32>
    %332 = vector.extract_strided_slice %243 {offsets = [0, 4], sizes = [8, 1], strides = [1, 1]} : vector<8x128xf32> to vector<8x1xf32>
    %333 = vector.extract_strided_slice %242 {offsets = [1, 0], sizes = [1, 128], strides = [1, 1]} : vector<8x128xf32> to vector<1x128xf32>
    %334 = vector.extract_strided_slice %242 {offsets = [4, 0], sizes = [1, 128], strides = [1, 1]} : vector<8x128xf32> to vector<1x128xf32>
    %335 = vector.broadcast %331 : vector<8x1xf32> to vector<8x128xf32>
    %336 = vector.broadcast %333 : vector<1x128xf32> to vector<8x128xf32>
    %337 = arith.subf %335, %336 : vector<8x128xf32>
    %338 = math.absf %337 : vector<8x128xf32>
    %339 = arith.addf %294, %338 : vector<8x128xf32>
    %340 = vector.broadcast %332 : vector<8x1xf32> to vector<8x128xf32>
    %341 = vector.broadcast %334 : vector<1x128xf32> to vector<8x128xf32>
    %342 = arith.subf %340, %341 : vector<8x128xf32>
    %343 = math.absf %342 : vector<8x128xf32>
    %344 = arith.addf %339, %343 : vector<8x128xf32>
    %cst_68 = arith.constant 5.000000e-01 : f32
    %345 = vector.broadcast %cst_68 : f32 to vector<8x1xf32>
    %346 = arith.mulf %345, %332 : vector<8x1xf32>
    %347 = arith.subf %331, %346 : vector<8x1xf32>
    %cst_69 = arith.constant 5.000000e-01 : f32
    %348 = vector.broadcast %cst_69 : f32 to vector<8x1xf32>
    %349 = arith.mulf %348, %332 : vector<8x1xf32>
    %350 = arith.addf %331, %349 : vector<8x1xf32>
    %cst_70 = arith.constant 5.000000e-01 : f32
    %351 = vector.broadcast %cst_70 : f32 to vector<1x128xf32>
    %352 = arith.mulf %351, %334 : vector<1x128xf32>
    %353 = arith.subf %333, %352 : vector<1x128xf32>
    %cst_71 = arith.constant 5.000000e-01 : f32
    %354 = vector.broadcast %cst_71 : f32 to vector<1x128xf32>
    %355 = arith.mulf %354, %334 : vector<1x128xf32>
    %356 = arith.addf %333, %355 : vector<1x128xf32>
    %357 = vector.broadcast %350 : vector<8x1xf32> to vector<8x128xf32>
    %358 = vector.broadcast %356 : vector<1x128xf32> to vector<8x128xf32>
    %359 = arith.minimumf %357, %358 : vector<8x128xf32>
    %360 = vector.broadcast %347 : vector<8x1xf32> to vector<8x128xf32>
    %361 = vector.broadcast %353 : vector<1x128xf32> to vector<8x128xf32>
    %362 = arith.maximumf %360, %361 : vector<8x128xf32>
    %363 = arith.subf %359, %362 : vector<8x128xf32>
    %cst_72 = arith.constant 0.000000e+00 : f32
    %364 = vector.broadcast %cst_72 : f32 to vector<8x128xf32>
    %365 = arith.maximumf %363, %364 : vector<8x128xf32>
    %366 = arith.mulf %316, %365 : vector<8x128xf32>
    %367 = vector.broadcast %350 : vector<8x1xf32> to vector<8x128xf32>
    %368 = vector.broadcast %356 : vector<1x128xf32> to vector<8x128xf32>
    %369 = arith.maximumf %367, %368 : vector<8x128xf32>
    %370 = vector.broadcast %347 : vector<8x1xf32> to vector<8x128xf32>
    %371 = vector.broadcast %353 : vector<1x128xf32> to vector<8x128xf32>
    %372 = arith.minimumf %370, %371 : vector<8x128xf32>
    %373 = arith.subf %369, %372 : vector<8x128xf32>
    %cst_73 = arith.constant 0.000000e+00 : f32
    %374 = vector.broadcast %cst_73 : f32 to vector<8x128xf32>
    %375 = arith.maximumf %373, %374 : vector<8x128xf32>
    %376 = arith.mulf %326, %375 : vector<8x128xf32>
    %377 = arith.subf %350, %347 : vector<8x1xf32>
    %378 = arith.mulf %328, %377 : vector<8x1xf32>
    %379 = arith.subf %356, %353 : vector<1x128xf32>
    %380 = arith.mulf %330, %379 : vector<1x128xf32>
    %381 = vector.extract_strided_slice %243 {offsets = [0, 2], sizes = [8, 1], strides = [1, 1]} : vector<8x128xf32> to vector<8x1xf32>
    %382 = vector.extract_strided_slice %243 {offsets = [0, 5], sizes = [8, 1], strides = [1, 1]} : vector<8x128xf32> to vector<8x1xf32>
    %383 = vector.extract_strided_slice %242 {offsets = [2, 0], sizes = [1, 128], strides = [1, 1]} : vector<8x128xf32> to vector<1x128xf32>
    %384 = vector.extract_strided_slice %242 {offsets = [5, 0], sizes = [1, 128], strides = [1, 1]} : vector<8x128xf32> to vector<1x128xf32>
    %385 = vector.broadcast %381 : vector<8x1xf32> to vector<8x128xf32>
    %386 = vector.broadcast %383 : vector<1x128xf32> to vector<8x128xf32>
    %387 = arith.subf %385, %386 : vector<8x128xf32>
    %388 = math.absf %387 : vector<8x128xf32>
    %389 = arith.addf %344, %388 : vector<8x128xf32>
    %390 = vector.broadcast %382 : vector<8x1xf32> to vector<8x128xf32>
    %391 = vector.broadcast %384 : vector<1x128xf32> to vector<8x128xf32>
    %392 = arith.subf %390, %391 : vector<8x128xf32>
    %393 = math.absf %392 : vector<8x128xf32>
    %394 = arith.addf %389, %393 : vector<8x128xf32>
    %cst_74 = arith.constant 5.000000e-01 : f32
    %395 = vector.broadcast %cst_74 : f32 to vector<8x1xf32>
    %396 = arith.mulf %395, %382 : vector<8x1xf32>
    %397 = arith.subf %381, %396 : vector<8x1xf32>
    %cst_75 = arith.constant 5.000000e-01 : f32
    %398 = vector.broadcast %cst_75 : f32 to vector<8x1xf32>
    %399 = arith.mulf %398, %382 : vector<8x1xf32>
    %400 = arith.addf %381, %399 : vector<8x1xf32>
    %cst_76 = arith.constant 5.000000e-01 : f32
    %401 = vector.broadcast %cst_76 : f32 to vector<1x128xf32>
    %402 = arith.mulf %401, %384 : vector<1x128xf32>
    %403 = arith.subf %383, %402 : vector<1x128xf32>
    %cst_77 = arith.constant 5.000000e-01 : f32
    %404 = vector.broadcast %cst_77 : f32 to vector<1x128xf32>
    %405 = arith.mulf %404, %384 : vector<1x128xf32>
    %406 = arith.addf %383, %405 : vector<1x128xf32>
    %407 = vector.broadcast %400 : vector<8x1xf32> to vector<8x128xf32>
    %408 = vector.broadcast %406 : vector<1x128xf32> to vector<8x128xf32>
    %409 = arith.minimumf %407, %408 : vector<8x128xf32>
    %410 = vector.broadcast %397 : vector<8x1xf32> to vector<8x128xf32>
    %411 = vector.broadcast %403 : vector<1x128xf32> to vector<8x128xf32>
    %412 = arith.maximumf %410, %411 : vector<8x128xf32>
    %413 = arith.subf %409, %412 : vector<8x128xf32>
    %cst_78 = arith.constant 0.000000e+00 : f32
    %414 = vector.broadcast %cst_78 : f32 to vector<8x128xf32>
    %415 = arith.maximumf %413, %414 : vector<8x128xf32>
    %416 = arith.mulf %366, %415 : vector<8x128xf32>
    %417 = vector.broadcast %400 : vector<8x1xf32> to vector<8x128xf32>
    %418 = vector.broadcast %406 : vector<1x128xf32> to vector<8x128xf32>
    %419 = arith.maximumf %417, %418 : vector<8x128xf32>
    %420 = vector.broadcast %397 : vector<8x1xf32> to vector<8x128xf32>
    %421 = vector.broadcast %403 : vector<1x128xf32> to vector<8x128xf32>
    %422 = arith.minimumf %420, %421 : vector<8x128xf32>
    %423 = arith.subf %419, %422 : vector<8x128xf32>
    %cst_79 = arith.constant 0.000000e+00 : f32
    %424 = vector.broadcast %cst_79 : f32 to vector<8x128xf32>
    %425 = arith.maximumf %423, %424 : vector<8x128xf32>
    %426 = arith.mulf %376, %425 : vector<8x128xf32>
    %427 = arith.subf %400, %397 : vector<8x1xf32>
    %428 = arith.mulf %378, %427 : vector<8x1xf32>
    %429 = arith.subf %406, %403 : vector<1x128xf32>
    %430 = arith.mulf %380, %429 : vector<1x128xf32>
    %cst_80 = arith.constant 0.166666672 : f32
    %431 = vector.broadcast %cst_80 : f32 to vector<8x128xf32>
    %432 = arith.mulf %394, %431 : vector<8x128xf32>
    %433 = vector.broadcast %428 : vector<8x1xf32> to vector<8x128xf32>
    %434 = vector.broadcast %430 : vector<1x128xf32> to vector<8x128xf32>
    %435 = arith.addf %433, %434 : vector<8x128xf32>
    %436 = arith.subf %435, %416 : vector<8x128xf32>
    %cst_81 = arith.constant 1.1920929E-7 : f32
    %437 = vector.broadcast %cst_81 : f32 to vector<8x128xf32>
    %438 = arith.addf %436, %437 : vector<8x128xf32>
    %439 = arith.divf %416, %438 : vector<8x128xf32>
    %440 = arith.subf %426, %436 : vector<8x128xf32>
    %cst_82 = arith.constant 1.1920929E-7 : f32
    %441 = vector.broadcast %cst_82 : f32 to vector<8x128xf32>
    %442 = arith.addf %426, %441 : vector<8x128xf32>
    %443 = arith.divf %440, %442 : vector<8x128xf32>
    %444 = arith.subf %439, %443 : vector<8x128xf32>
    %cst_83 = arith.constant 5.000000e+00 : f32
    %445 = vector.broadcast %cst_83 : f32 to vector<8x128xf32>
    %446 = arith.mulf %445, %432 : vector<8x128xf32>
    %cst_84 = arith.constant 1.000000e+00 : f32
    %447 = vector.broadcast %cst_84 : f32 to vector<8x128xf32>
    %448 = arith.subf %447, %444 : vector<8x128xf32>
    %cst_85 = arith.constant 2.000000e+00 : f32
    %449 = vector.broadcast %cst_85 : f32 to vector<8x128xf32>
    %450 = arith.mulf %449, %448 : vector<8x128xf32>
    %451 = arith.addf %446, %450 : vector<8x128xf32>
    %452 = vector.extract_strided_slice %244 {offsets = [0, 0], sizes = [1, 128], strides = [1, 1]} : vector<8x128xf32> to vector<1x128xf32>
    %453 = vector.extract_strided_slice %244 {offsets = [1, 0], sizes = [1, 128], strides = [1, 1]} : vector<8x128xf32> to vector<1x128xf32>
    %454 = vector.broadcast %273 : vector<8x1xf32> to vector<8x128xf32>
    %455 = arith.addf %454, %451 : vector<8x128xf32>
    %456 = vector.broadcast %452 : vector<1x128xf32> to vector<8x128xf32>
    %457 = arith.mulf %456, %455 : vector<8x128xf32>
    %458 = vector.broadcast %453 : vector<1x128xf32> to vector<8x128xf32>
    %459 = vector.broadcast %275 : vector<8x1xf32> to vector<8x128xf32>
    %460 = arith.mulf %458, %459 : vector<8x128xf32>
    %461 = arith.addf %457, %460 : vector<8x128xf32>
    %c1_86 = arith.constant 1 : index
    %c0_87 = arith.constant 0 : index
    %c0_88 = arith.constant 0 : index
    %462 = vector.load %arg2[%c1_86, %c0_87, %c0_88] : memref<2x8x128xf32, #tpu.memory_space<vmem>>, vector<1x8x128xf32>
    %463 = vector.shape_cast %462 : vector<1x8x128xf32> to vector<8x128xf32>
    %464 = vector.shape_cast %461 : vector<8x128xf32> to vector<1x8x128xf32>
    tpu.vector_store %arg2[%c1_86, %c0_87, %c0_88], %464 {strides = array<i32>} : memref<2x8x128xf32, #tpu.memory_space<vmem>>, vector<1x8x128xf32>,
    %465 = tpu.iota {dimensions = array<i32: 1>} : vector<8x128xi32>
    %c0_i32_89 = arith.constant 0 : i32
    %466 = vector.broadcast %c0_i32_89 : i32 to vector<8x128xi32>
    %467 = arith.cmpi eq, %465, %466 : vector<8x128xi32>
    %c1_i32_90 = arith.constant 1 : i32
    %468 = vector.broadcast %c1_i32_90 : i32 to vector<8x128xi32>
    %469 = arith.cmpi eq, %465, %468 : vector<8x128xi32>
    %cst_91 = arith.constant 0.000000e+00 : f32
    %470 = vector.shape_cast %269 : vector<8x1xf32> to vector<8x1xf32>
    %471 = vector.broadcast %470 : vector<8x1xf32> to vector<8x128xf32>
    %472 = vector.broadcast %cst_91 : f32 to vector<8x128xf32>
    %473 = arith.select %469, %471, %472 : vector<8x128xi1>, vector<8x128xf32>
    %474 = vector.shape_cast %267 : vector<8x1xf32> to vector<8x1xf32>
    %475 = vector.broadcast %474 : vector<8x1xf32> to vector<8x128xf32>
    %476 = arith.select %467, %475, %473 : vector<8x128xi1>, vector<8x128xf32>
    %c1_92 = arith.constant 1 : index
    %c0_93 = arith.constant 0 : index
    %c0_94 = arith.constant 0 : index
    %477 = vector.load %arg3[%c1_92, %c0_93, %c0_94] : memref<2x8x128xf32, #tpu.memory_space<vmem>>, vector<1x8x128xf32>
    %478 = vector.shape_cast %477 : vector<1x8x128xf32> to vector<8x128xf32>
    %479 = vector.shape_cast %476 : vector<8x128xf32> to vector<1x8x128xf32>
    tpu.vector_store %arg3[%c1_92, %c0_93, %c0_94], %479 {strides = array<i32>} : memref<2x8x128xf32, #tpu.memory_space<vmem>>, vector<1x8x128xf32>,
    return
  }
  func.func @transform_0(%arg0: i32) -> (i32, i32, i32) {
    %c0_i32 = arith.constant 0 : i32
    %c0_i32_0 = arith.constant 0 : i32
    %c0_i32_1 = arith.constant 0 : i32
    return %arg0, %c0_i32, %c0_i32_0 : i32, i32, i32
  }
  func.func @transform_1(%arg0: i32) -> (i32, i32, i32) {
    %c0_i32 = arith.constant 0 : i32
    %c0_i32_0 = arith.constant 0 : i32
    %c0_i32_1 = arith.constant 0 : i32
    return %arg0, %c0_i32, %c0_i32_0 : i32, i32, i32
  }
  func.func @transform_2(%arg0: i32) -> (i32, i32, i32) {
    %c0_i32 = arith.constant 0 : i32
    %c0_i32_0 = arith.constant 0 : i32
    %c0_i32_1 = arith.constant 0 : i32
    return %arg0, %c0_i32, %c0_i32_0 : i32, i32, i32
  }
}

</mosaic_0001>

<llo_original>
// kernel: tpu_custom_call.1
$region0: #{tpu_custom_call.1}
  #allocation0 [shape = 'u32[]', space=smem, size = 0x4, offset = 0x4, fixed_abs, tag = 'smem constant byte address 0x4 - core index']
  #allocation1 [shape = 'u32[72,128]{1,0:T(1,128)}', space=vmem, size = 0x9000, scoped, tag = 'internal scratch']
  %s0 = inlined_call_operand.hbm [shape: f32[4,24,128], index: 0, kind: input, shape index: {}]
  %s1 = inlined_call_operand.hbm [shape: f32[4,8,128], index: 1, kind: output, shape index: {0}]
  %s2 = inlined_call_operand.hbm [shape: f32[4,8,128], index: 2, kind: output, shape index: {1}]
  %3 = xla_tuple %s1, %s2
  %s4 = sld [smem:[#allocation0]]
  $region49: #{tpu_custom_call.1} parent=0
    _
  %s6 = ssub.s32 1, %s4
  %s7 = scalar_select 0, %s6, %s4
  $region1: #{tpu_custom_call.1} parent=0
    #allocation2 [shape = 'u8[49152]{0}', space=vmem, size = 0xc000, scoped, tag = 'input window, operand 0']
    #allocation3 [shape = 's32[2]{0}', space=sflag, size = 0x8, scoped, tag = 'scoped memory for tpu_custom_call.1']
    #allocation4 [shape = 's32[2]{0}', space=sflag, size = 0x8, scoped, tag = 'scoped memory for tpu_custom_call.1']
    #allocation5 [shape = 'u8[16384]{0}', space=vmem, size = 0x4000, scoped, tag = 'output window, operand 0']
    #allocation6 [shape = 'u8[16384]{0}', space=vmem, size = 0x4000, scoped, tag = 'output window, operand 1']
    #allocation7 [shape = 's32[2]{0}', space=sflag, size = 0x8, scoped, tag = 'scoped memory for tpu_custom_call.1']
    %8 = vsyncpa [#allocation3], 0
    %s9 = scalar_lea.sflag [#allocation3], 1
    %10 = vsyncpa %s9, 0
    %11 = vsyncpa [#allocation4], 0
    %s12 = scalar_lea.sflag [#allocation4], 1
    %13 = vsyncpa %s12, 0
    %14 = vsyncpa [#allocation7], 0
    %s15 = scalar_lea.sflag [#allocation7], 1
    %16 = vsyncpa %s15, 0
    loop: start=0, step=1, limit=4
    $region2: #{tpu_custom_call.1} parent=1 // loop_pre_header
      _
    $region3: #{tpu_custom_call.1} parent=1 // loop_header
      %s18 = sphi 0, %s22
      %p19 = scmp.ge.s32.totalorder %s18, 4
      %s28 = sphi 0, %s30
      %s31 = sphi 0, %s28
      %s32 = sphi 0, %s31
      %s48 = sphi 0, %s32
      %s54 = sphi 0, %s56
      %s57 = sphi 0, %s54
      %s58 = sphi 0, %s57
      %s74 = sphi 0, %s58
      %s80 = sphi 0, %s82
      %s83 = sphi 0, %s80
      %s84 = sphi 0, %s83
      %s100 = sphi 0, %s84
    $region4: #{tpu_custom_call.1} parent=1 // loop_header_branch
      %21 = sbr.rel (%p19) target = $region8
    $region5: #{tpu_custom_call.1} parent=1 // loop_body
      %s23 = ssub.s32 %s18, 1
      %s24 = ssub.s32 %s18, 2
      %s25 = sadd.s32 %s18, 1
      %s26 = ssub.s32 %s18, %s25
      %p27 = scmp.eq.s32.totalorder %s26, 0
      %s29 = sadd.s32 %s28, 1
      %s30 = scalar_select %p27, %s28, %s29
      %p33 = pneg %p27
      %p34 = scmp.eq.s32.totalorder %s18, 1
      %p35 = por %p33, %p34
      %p36 = scmp.ne.s32.totalorder %s28, %s31
      %p37 = scmp.eq.s32.totalorder %s18, 0
      %p38 = por %p36, %p37
      %p39 = scmp.ne.s32.totalorder %s28, %s31
      %p40 = scmp.eq.s32.totalorder %s23, 1
      %p41 = por %p39, %p40
      %p42 = scmp.ne.s32.totalorder %s31, %s32
      %p43 = scmp.eq.s32.totalorder %s23, 0
      %p44 = por %p42, %p43
      %p45 = scmp.ne.s32.totalorder %s31, %s32
      %p46 = scmp.eq.s32.totalorder %s24, 1
      %p47 = por %p45, %p46
      %p49 = scmp.ne.s32.totalorder %s32, %s48
      %p50 = scmp.eq.s32.totalorder %s24, 0
      %p51 = por %p49, %p50
      %s52 = ssub.s32 %s18, %s25
      %p53 = scmp.eq.s32.totalorder %s52, 0
      %s55 = sadd.s32 %s54, 1
      %s56 = scalar_select %p53, %s54, %s55
      %p59 = pneg %p53
      %p60 = scmp.eq.s32.totalorder %s18, 1
      %p61 = por %p59, %p60
      %p62 = scmp.ne.s32.totalorder %s54, %s57
      %p63 = scmp.eq.s32.totalorder %s18, 0
      %p64 = por %p62, %p63
      %p65 = scmp.ne.s32.totalorder %s54, %s57
      %p66 = scmp.eq.s32.totalorder %s23, 1
      %p67 = por %p65, %p66
      %p68 = scmp.ne.s32.totalorder %s57, %s58
      %p69 = scmp.eq.s32.totalorder %s23, 0
      %p70 = por %p68, %p69
      %p71 = scmp.ne.s32.totalorder %s57, %s58
      %p72 = scmp.eq.s32.totalorder %s24, 1
      %p73 = por %p71, %p72
      %p75 = scmp.ne.s32.totalorder %s58, %s74
      %p76 = scmp.eq.s32.totalorder %s24, 0
      %p77 = por %p75, %p76
      %s78 = ssub.s32 %s18, %s25
      %p79 = scmp.eq.s32.totalorder %s78, 0
      %s81 = sadd.s32 %s80, 1
      %s82 = scalar_select %p79, %s80, %s81
      %p85 = pneg %p79
      %p86 = scmp.eq.s32.totalorder %s18, 1
      %p87 = por %p85, %p86
      %p88 = scmp.ne.s32.totalorder %s80, %s83
      %p89 = scmp.eq.s32.totalorder %s18, 0
      %p90 = por %p88, %p89
      %p91 = scmp.ne.s32.totalorder %s80, %s83
      %p92 = scmp.eq.s32.totalorder %s23, 1
      %p93 = por %p91, %p92
      %p94 = scmp.ne.s32.totalorder %s83, %s84
      %p95 = scmp.eq.s32.totalorder %s23, 0
      %p96 = por %p94, %p95
      %p97 = scmp.ne.s32.totalorder %s83, %s84
      %p98 = scmp.eq.s32.totalorder %s24, 1
      %p99 = por %p97, %p98
      %p101 = scmp.ne.s32.totalorder %s84, %s100
      %p102 = scmp.eq.s32.totalorder %s24, 0
      %p103 = por %p101, %p102
      %p104 = scmp.le.s32.totalorder 1, %s18
      %p105 = scmp.lt.s32.totalorder %s18, 3
      %p106 = pnand %p104, %p105
      %p107 = pneg %p106
      // Predicated region
      $region9: #{tpu_custom_call.1} parent=5 // pred_check
        _
      $region10: #{tpu_custom_call.1} parent=5 // pred_check_branch
        %109 = sbr.rel (%p106) target = $region12
      $region11: #{tpu_custom_call.1} parent=5 // pred_region
        %s110 = ssub.s32 %s18, 1
      $region12: #{tpu_custom_call.1} parent=5 // pred_fallthru
        _
      %p111 = scmp.lt.s32.totalorder %s18, 2
      // Predicated region
      $region13: #{tpu_custom_call.1} parent=5 // pred_check
        %p112 = pneg %p111
      $region14: #{tpu_custom_call.1} parent=5 // pred_check_branch
        %114 = sbr.rel (%p112) target = $region16
      $region15: #{tpu_custom_call.1} parent=5 // pred_region
        // Predicated region
        $region17: #{tpu_custom_call.1} parent=15 // pred_check
          %p115 = pneg %p38
        $region18: #{tpu_custom_call.1} parent=15 // pred_check_branch
          %117 = sbr.rel (%p115) target = $region20
        $region19: #{tpu_custom_call.1} parent=15 // pred_region
          %s118 = sand.u32 %s28, 1
          %s119 = scalar_lea.sflag [#allocation3], %s118
          %s120 = sand.u32 %s28, 1
          %s121 = smul.addr %s120, 48
          %s122 = scalar_lea.vmem [#allocation2], %s121
          %s123 = smul.u32 2, %s18
          %125 = vsyncadd %s119, 0
          %s126 = smul.addr %s123, 3
          %s127 = smul.addr %s126, 8
          %s128 = scalar_lea.hbm %s0, %s127
          %s129 = sshll.u32 %s128, 4
          %s130 = int_to_ptr.hbm [resolvable:$true] %s129
          %s131 = sshll.u32 %s122, 4
          %s132 = int_to_ptr.vmem [resolvable:$true] %s131
          %137 = dma.hbm_to_vmem [thread:$0]  %s130, 768, %s132, %s119, 128, 128, 8
        $region20: #{tpu_custom_call.1} parent=15 // pred_fallthru
          _
      $region16: #{tpu_custom_call.1} parent=5 // pred_fallthru
        _
      %p138 = scmp.le.s32.totalorder 1, %s18
      %p139 = scmp.lt.s32.totalorder %s18, 3
      %p140 = pnand %p138, %p139
      %p141 = pneg %p140
      // Predicated region
      $region21: #{tpu_custom_call.1} parent=5 // pred_check
        _
      $region22: #{tpu_custom_call.1} parent=5 // pred_check_branch
        %143 = sbr.rel (%p140) target = $region24
      $region23: #{tpu_custom_call.1} parent=5 // pred_region
        %s144 = ssub.s32 %s18, 1
        %s145 = sand.u32 %s31, 1
        %s146 = scalar_lea.sflag [#allocation3], %s145
        %s147 = sand.u32 %s31, 1
        %s148 = smul.addr %s147, 48
        %s149 = scalar_lea.vmem [#allocation2], %s148
        // Predicated region
        $region25: #{tpu_custom_call.1} parent=23 // pred_check
          %p150 = pneg %p44
        $region26: #{tpu_custom_call.1} parent=23 // pred_check_branch
          %152 = sbr.rel (%p150) target = $region28
        $region27: #{tpu_custom_call.1} parent=23 // pred_region
          %154 = dma.done %s146, 768
        $region28: #{tpu_custom_call.1} parent=23 // pred_fallthru
          _
        %s155 = sand.u32 %s31, 1
        %s156 = scalar_lea.sflag [#allocation3], %s155
        %s157 = sand.u32 %s31, 1
        %s158 = smul.addr %s157, 48
        %s159 = scalar_lea.vmem [#allocation2], %s158
        %p160 = pneg %p44
        %p161 = pneg %p41
        %p162 = pneg %p70
        %p163 = pneg %p67
        %s164 = sand.u32 %s57, 1
        %s165 = scalar_lea.sflag [#allocation4], %s164
        %s166 = sand.u32 %s57, 1
        %s167 = smul.addr %s166, 16
        %s168 = scalar_lea.vmem [#allocation5], %s167
        %p169 = pneg %p96
        %p170 = pneg %p93
        %s171 = sand.u32 %s83, 1
        %s172 = scalar_lea.sflag [#allocation7], %s171
        %s173 = sand.u32 %s83, 1
        %s174 = smul.addr %s173, 16
        %s175 = scalar_lea.vmem [#allocation6], %s174
        %s176 = smul.u32 2, %s23
        %s177 = smul.u32 2, %s23
        %s178 = smul.u32 2, %s23
        %v179 = vld [vmem:[%s149] sm:$0xff]
        %v180 = vld [vmem:[%s149 + $0x8] sm:$0xff]
        %v181 = vld [vmem:[%s149 + $0x10] sm:$0xff]
        %v182 = vand.u32 2147483647, %v180
        %v183 = vsub.f32 0.0, %v182
        %v184 = vmul.f32 %v183, 1.442695
        %v185 = vpow.pop %v184
        %v186 = vadd.f32 %v185, 1.0
        %v187 = vrcp.pop %v186
        %v188 = vmul.f32 %v186, %v187
        %v189 = vsub.f32 1.0, %v188
        %v190 = vmul.f32 %v187, %v189
        %v191 = vadd.f32 %v187, %v190
        %vm192 = vweird.f32 %v186
        %vm193 = vweird.f32 %v187
        %vm194 = vmor %vm192, %vm193
        %v195 = vsel %vm194, %v187, %v191
        %v196 = vand.u32 2147483647, %v186
        %vm197 = vcmp.eq.f32.partialorder %v196, 8.507059e+37
        %v198 = vand.u32 %v186, 2147483648
        %v199 = vor.u32 1.1754944e-38, %v198
        %v200 = vsel %vm197, %v199, %v195
        %v201 = vmul.f32 1.0, %v200
        %vm202 = vcmp.ge.f32.partialorder %v180, 0.0
        %v203 = vmul.f32 %v185, %v201
        %v204 = vsel %vm202, %v201, %v203
        %v205 = vadd.f32 %v185, 1.0
        %v206 = vlog2.pop %v205
        %v207 = vmul.f32 %v206, 0.6931472
        %v208 = vmul.f32 -0.5, %v185
        %v209 = vadd.f32 %v208, 1.0
        %v210 = vmul.f32 %v209, %v185
        %v211 = vand.u32 2147483647, %v185
        %vm212 = vcmp.lt.f32.partialorder %v211, 0.0004427343
        %v213 = vsel %vm212, %v210, %v207
        %v214 = vmax.f32 %v180, 0.0
        %v215 = vsub.f32 %v214, %v180
        %v216 = vadd.f32 %v215, %v213
        %v217 = vadd.f32 %v214, %v213
        %v218 = vsub.f32 1.0, %v204
        %v219 = vmul.f32 %v218, %v218
        %v220 = vmul.f32 %v216, %v219
        %v221 = vmul.f32 %v204, %v204
        %v222 = vmul.f32 %v217, %v221
        %v223 = vmul.f32 %v218, 2.0
        %v224 = vmul.f32 %v204, 2.0
        %226 = vset.pattern.permute.xlu0 0
        %227 = vperm.xlu0 %226, %v180
        %v228 = vpop.permute.xlu0 %227
        %v230 = vperm.slane %v179, 0
        %v231 = vsub.f32 %v228, %v230
        %v232 = vand.u32 2147483647, %v231
        %v233 = vadd.f32 %v232, 0.0
        %234 = vset.pattern.permute.xlu0 3
        %235 = vperm.xlu0 %234, %v180
        %v236 = vpop.permute.xlu0 %235
        %v238 = vperm.slane %v179, 3
        %v239 = vsub.f32 %v236, %v238
        %v240 = vand.u32 2147483647, %v239
        %v241 = vadd.f32 %v233, %v240
        %v242 = vmul.f32 %v180, 0.5
        %244 = vrot.lane.b32.xlu0 %v242, 125
        %v245 = vpop.permute.xlu0 %244
        %v247 = vsub.f32 %v180, %v245
        %v248 = vadd.f32 %v180, %v245
        %v249 = vmul.f32 %v179, 0.5
        %v251 = vrot.slane %v249, 3
        %v253 = vsub.f32 %v179, %v251
        %v254 = vadd.f32 %v179, %v251
        %256 = vset.pattern.permute.xlu0 0
        %257 = vperm.xlu0 %256, %v248
        %v258 = vpop.permute.xlu0 %257
        %v260 = vperm.slane %v254, 0
        %v261 = vmin.f32 %v258, %v260
        %263 = vset.pattern.permute.xlu0 0
        %264 = vperm.xlu0 %263, %v247
        %v265 = vpop.permute.xlu0 %264
        %v267 = vperm.slane %v253, 0
        %v268 = vmax.f32 %v265, %v267
        %v269 = vsub.f32 %v261, %v268
        %v270 = vmax.f32 %v269, 0.0
        %v271 = vmax.f32 %v258, %v260
        %v272 = vmin.f32 %v265, %v267
        %v273 = vsub.f32 %v271, %v272
        %v274 = vmax.f32 %v273, 0.0
        %v275 = vsub.f32 %v248, %v247
        %v276 = vsub.f32 %v254, %v253
        %277 = vset.pattern.permute.xlu0 1
        %278 = vperm.xlu0 %277, %v180
        %v279 = vpop.permute.xlu0 %278
        %v281 = vperm.slane %v179, 1
        %v282 = vsub.f32 %v279, %v281
        %v283 = vand.u32 2147483647, %v282
        %v284 = vadd.f32 %v241, %v283
        %285 = vset.pattern.permute.xlu0 4
        %286 = vperm.xlu0 %285, %v180
        %v287 = vpop.permute.xlu0 %286
        %v289 = vperm.slane %v179, 4
        %v290 = vsub.f32 %v287, %v289
        %v291 = vand.u32 2147483647, %v290
        %v292 = vadd.f32 %v284, %v291
        %293 = vset.pattern.permute.xlu0 1
        %294 = vperm.xlu0 %293, %v248
        %v295 = vpop.permute.xlu0 %294
        %v297 = vperm.slane %v254, 1
        %v298 = vmin.f32 %v295, %v297
        %299 = vset.pattern.permute.xlu0 1
        %300 = vperm.xlu0 %299, %v247
        %v301 = vpop.permute.xlu0 %300
        %v303 = vperm.slane %v253, 1
        %v304 = vmax.f32 %v301, %v303
        %v305 = vsub.f32 %v298, %v304
        %v306 = vmax.f32 %v305, 0.0
        %v307 = vmul.f32 %v270, %v306
        %v308 = vmax.f32 %v295, %v297
        %v309 = vmin.f32 %v301, %v303
        %v310 = vsub.f32 %v308, %v309
        %v311 = vmax.f32 %v310, 0.0
        %v312 = vmul.f32 %v274, %v311
        %314 = vrot.lane.b32.xlu0 %v275, 127
        %v315 = vpop.permute.xlu0 %314
        %v317 = vmul.f32 %v275, %v315
        %v319 = vrot.slane %v276, 1
        %v321 = vmul.f32 %v276, %v319
        %322 = vset.pattern.permute.xlu0 2
        %323 = vperm.xlu0 %322, %v180
        %v324 = vpop.permute.xlu0 %323
        %v326 = vperm.slane %v179, 2
        %v327 = vsub.f32 %v324, %v326
        %v328 = vand.u32 2147483647, %v327
        %v329 = vadd.f32 %v292, %v328
        %330 = vset.pattern.permute.xlu0 5
        %331 = vperm.xlu0 %330, %v180
        %v332 = vpop.permute.xlu0 %331
        %v334 = vperm.slane %v179, 5
        %v335 = vsub.f32 %v332, %v334
        %v336 = vand.u32 2147483647, %v335
        %v337 = vadd.f32 %v329, %v336
        %338 = vset.pattern.permute.xlu0 2
        %339 = vperm.xlu0 %338, %v248
        %v340 = vpop.permute.xlu0 %339
        %v342 = vperm.slane %v254, 2
        %v343 = vmin.f32 %v340, %v342
        %344 = vset.pattern.permute.xlu0 2
        %345 = vperm.xlu0 %344, %v247
        %v346 = vpop.permute.xlu0 %345
        %v348 = vperm.slane %v253, 2
        %v349 = vmax.f32 %v346, %v348
        %v350 = vsub.f32 %v343, %v349
        %v351 = vmax.f32 %v350, 0.0
        %v352 = vmul.f32 %v307, %v351
        %v353 = vmax.f32 %v340, %v342
        %v354 = vmin.f32 %v346, %v348
        %v355 = vsub.f32 %v353, %v354
        %v356 = vmax.f32 %v355, 0.0
        %v357 = vmul.f32 %v312, %v356
        %358 = vrot.lane.b32.xlu0 %v275, 126
        %v359 = vpop.permute.xlu0 %358
        %v361 = vmul.f32 %v317, %v359
        %v362 = vrot.slane %v276, 2
        %v364 = vmul.f32 %v321, %v362
        %v365 = vmul.f32 %v337, 0.16666667
        %367 = vset.pattern.permute.xlu0 0
        %368 = vperm.xlu0 %367, %v361
        %v369 = vpop.permute.xlu0 %368
        %v371 = vperm.slane %v364, 0
        %v372 = vadd.f32 %v369, %v371
        %v373 = vsub.f32 %v372, %v352
        %v374 = vadd.f32 %v373, 1.1920929e-07
        %v375 = vrcp.pop %v374
        %v376 = vmul.f32 %v374, %v375
        %v377 = vsub.f32 1.0, %v376
        %v378 = vmul.f32 %v375, %v377
        %v379 = vadd.f32 %v375, %v378
        %vm380 = vweird.f32 %v374
        %vm381 = vweird.f32 %v375
        %vm382 = vmor %vm380, %vm381
        %v383 = vsel %vm382, %v375, %v379
        %v384 = vand.u32 2147483647, %v374
        %vm385 = vcmp.eq.f32.partialorder %v384, 8.507059e+37
        %v386 = vand.u32 %v374, 2147483648
        %v387 = vor.u32 1.1754944e-38, %v386
        %v388 = vsel %vm385, %v387, %v383
        %v389 = vmul.f32 %v352, %v388
        %v390 = vsub.f32 %v357, %v373
        %v391 = vadd.f32 %v357, 1.1920929e-07
        %v392 = vrcp.pop %v391
        %v393 = vmul.f32 %v391, %v392
        %v394 = vsub.f32 1.0, %v393
        %v395 = vmul.f32 %v392, %v394
        %v396 = vadd.f32 %v392, %v395
        %vm397 = vweird.f32 %v391
        %vm398 = vweird.f32 %v392
        %vm399 = vmor %vm397, %vm398
        %v400 = vsel %vm399, %v392, %v396
        %v401 = vand.u32 2147483647, %v391
        %vm402 = vcmp.eq.f32.partialorder %v401, 8.507059e+37
        %v403 = vand.u32 %v391, 2147483648
        %v404 = vor.u32 1.1754944e-38, %v403
        %v405 = vsel %vm402, %v404, %v400
        %v406 = vmul.f32 %v390, %v405
        %v407 = vsub.f32 %v389, %v406
        %v408 = vmul.f32 %v365, 5.0
        %v409 = vsub.f32 1.0, %v407
        %v410 = vmul.f32 %v409, 2.0
        %v411 = vadd.f32 %v408, %v410
        %413 = vset.pattern.permute.xlu0 6
        %414 = vperm.xlu0 %413, %v223
        %v415 = vpop.permute.xlu0 %414
        %v417 = vadd.f32 %v415, %v411
        %v418 = vperm.slane %v181, 0
        %v419 = vmul.f32 %v418, %v417
        %v420 = vperm.slane %v181, 1
        %422 = vset.pattern.permute.xlu0 6
        %423 = vperm.xlu0 %422, %v224
        %v424 = vpop.permute.xlu0 %423
        %v426 = vmul.f32 %v420, %v424
        %v427 = vadd.f32 %v419, %v426
        %428 = vst [vmem:[%s168] sm:$0xff] %v427
        %v429 = vlaneseq
        %v430 = vand.u32 %v429, 127
        %vm431 = vcmp.eq.s32.totalorder %v430, 0
        %vm432 = vcmp.eq.s32.totalorder %v430, 1
        %434 = vset.pattern.permute.xlu0 6
        %435 = vperm.xlu0 %434, %v222
        %v436 = vpop.permute.xlu0 %435
        %v438 = vsel %vm432, %v436, 0.0
        %440 = vset.pattern.permute.xlu0 6
        %441 = vperm.xlu0 %440, %v220
        %v442 = vpop.permute.xlu0 %441
        %v444 = vsel %vm431, %v442, %v438
        %445 = vst [vmem:[%s175] sm:$0xff] %v444
        %s446 = scalar_lea.vmem %s149, 24 [#allocation2]
        %v447 = vld [vmem:[%s446] sm:$0xff]
        %v448 = vld [vmem:[%s446 + $0x8] sm:$0xff]
        %v449 = vld [vmem:[%s446 + $0x10] sm:$0xff]
        %v450 = vand.u32 2147483647, %v448
        %v451 = vsub.f32 0.0, %v450
        %v452 = vmul.f32 %v451, 1.442695
        %v453 = vpow.pop %v452
        %v454 = vadd.f32 %v453, 1.0
        %v455 = vrcp.pop %v454
        %v456 = vmul.f32 %v454, %v455
        %v457 = vsub.f32 1.0, %v456
        %v458 = vmul.f32 %v455, %v457
        %v459 = vadd.f32 %v455, %v458
        %vm460 = vweird.f32 %v454
        %vm461 = vweird.f32 %v455
        %vm462 = vmor %vm460, %vm461
        %v463 = vsel %vm462, %v455, %v459
        %v464 = vand.u32 2147483647, %v454
        %vm465 = vcmp.eq.f32.partialorder %v464, 8.507059e+37
        %v466 = vand.u32 %v454, 2147483648
        %v467 = vor.u32 1.1754944e-38, %v466
        %v468 = vsel %vm465, %v467, %v463
        %v469 = vmul.f32 1.0, %v468
        %vm470 = vcmp.ge.f32.partialorder %v448, 0.0
        %v471 = vmul.f32 %v453, %v469
        %v472 = vsel %vm470, %v469, %v471
        %v473 = vadd.f32 %v453, 1.0
        %v474 = vlog2.pop %v473
        %v475 = vmul.f32 %v474, 0.6931472
        %v476 = vmul.f32 -0.5, %v453
        %v477 = vadd.f32 %v476, 1.0
        %v478 = vmul.f32 %v477, %v453
        %v479 = vand.u32 2147483647, %v453
        %vm480 = vcmp.lt.f32.partialorder %v479, 0.0004427343
        %v481 = vsel %vm480, %v478, %v475
        %v482 = vmax.f32 %v448, 0.0
        %v483 = vsub.f32 %v482, %v448
        %v484 = vadd.f32 %v483, %v481
        %v485 = vadd.f32 %v482, %v481
        %v486 = vsub.f32 1.0, %v472
        %v487 = vmul.f32 %v486, %v486
        %v488 = vmul.f32 %v484, %v487
        %v489 = vmul.f32 %v472, %v472
        %v490 = vmul.f32 %v485, %v489
        %v491 = vmul.f32 %v486, 2.0
        %v492 = vmul.f32 %v472, 2.0
        %494 = vset.pattern.permute.xlu0 0
        %495 = vperm.xlu0 %494, %v448
        %v496 = vpop.permute.xlu0 %495
        %v498 = vperm.slane %v447, 0
        %v499 = vsub.f32 %v496, %v498
        %v500 = vand.u32 2147483647, %v499
        %v501 = vadd.f32 %v500, 0.0
        %502 = vset.pattern.permute.xlu0 3
        %503 = vperm.xlu0 %502, %v448
        %v504 = vpop.permute.xlu0 %503
        %v506 = vperm.slane %v447, 3
        %v507 = vsub.f32 %v504, %v506
        %v508 = vand.u32 2147483647, %v507
        %v509 = vadd.f32 %v501, %v508
        %v510 = vmul.f32 %v448, 0.5
        %512 = vrot.lane.b32.xlu0 %v510, 125
        %v513 = vpop.permute.xlu0 %512
        %v515 = vsub.f32 %v448, %v513
        %v516 = vadd.f32 %v448, %v513
        %v517 = vmul.f32 %v447, 0.5
        %v519 = vrot.slane %v517, 3
        %v521 = vsub.f32 %v447, %v519
        %v522 = vadd.f32 %v447, %v519
        %524 = vset.pattern.permute.xlu0 0
        %525 = vperm.xlu0 %524, %v516
        %v526 = vpop.permute.xlu0 %525
        %v528 = vperm.slane %v522, 0
        %v529 = vmin.f32 %v526, %v528
        %531 = vset.pattern.permute.xlu0 0
        %532 = vperm.xlu0 %531, %v515
        %v533 = vpop.permute.xlu0 %532
        %v535 = vperm.slane %v521, 0
        %v536 = vmax.f32 %v533, %v535
        %v537 = vsub.f32 %v529, %v536
        %v538 = vmax.f32 %v537, 0.0
        %v539 = vmax.f32 %v526, %v528
        %v540 = vmin.f32 %v533, %v535
        %v541 = vsub.f32 %v539, %v540
        %v542 = vmax.f32 %v541, 0.0
        %v543 = vsub.f32 %v516, %v515
        %v544 = vsub.f32 %v522, %v521
        %545 = vset.pattern.permute.xlu0 1
        %546 = vperm.xlu0 %545, %v448
        %v547 = vpop.permute.xlu0 %546
        %v549 = vperm.slane %v447, 1
        %v550 = vsub.f32 %v547, %v549
        %v551 = vand.u32 2147483647, %v550
        %v552 = vadd.f32 %v509, %v551
        %553 = vset.pattern.permute.xlu0 4
        %554 = vperm.xlu0 %553, %v448
        %v555 = vpop.permute.xlu0 %554
        %v557 = vperm.slane %v447, 4
        %v558 = vsub.f32 %v555, %v557
        %v559 = vand.u32 2147483647, %v558
        %v560 = vadd.f32 %v552, %v559
        %561 = vset.pattern.permute.xlu0 1
        %562 = vperm.xlu0 %561, %v516
        %v563 = vpop.permute.xlu0 %562
        %v565 = vperm.slane %v522, 1
        %v566 = vmin.f32 %v563, %v565
        %567 = vset.pattern.permute.xlu0 1
        %568 = vperm.xlu0 %567, %v515
        %v569 = vpop.permute.xlu0 %568
        %v571 = vperm.slane %v521, 1
        %v572 = vmax.f32 %v569, %v571
        %v573 = vsub.f32 %v566, %v572
        %v574 = vmax.f32 %v573, 0.0
        %v575 = vmul.f32 %v538, %v574
        %v576 = vmax.f32 %v563, %v565
        %v577 = vmin.f32 %v569, %v571
        %v578 = vsub.f32 %v576, %v577
        %v579 = vmax.f32 %v578, 0.0
        %v580 = vmul.f32 %v542, %v579
        %582 = vrot.lane.b32.xlu0 %v543, 127
        %v583 = vpop.permute.xlu0 %582
        %v585 = vmul.f32 %v543, %v583
        %v587 = vrot.slane %v544, 1
        %v589 = vmul.f32 %v544, %v587
        %590 = vset.pattern.permute.xlu0 2
        %591 = vperm.xlu0 %590, %v448
        %v592 = vpop.permute.xlu0 %591
        %v594 = vperm.slane %v447, 2
        %v595 = vsub.f32 %v592, %v594
        %v596 = vand.u32 2147483647, %v595
        %v597 = vadd.f32 %v560, %v596
        %598 = vset.pattern.permute.xlu0 5
        %599 = vperm.xlu0 %598, %v448
        %v600 = vpop.permute.xlu0 %599
        %v602 = vperm.slane %v447, 5
        %v603 = vsub.f32 %v600, %v602
        %v604 = vand.u32 2147483647, %v603
        %v605 = vadd.f32 %v597, %v604
        %606 = vset.pattern.permute.xlu0 2
        %607 = vperm.xlu0 %606, %v516
        %v608 = vpop.permute.xlu0 %607
        %v610 = vperm.slane %v522, 2
        %v611 = vmin.f32 %v608, %v610
        %612 = vset.pattern.permute.xlu0 2
        %613 = vperm.xlu0 %612, %v515
        %v614 = vpop.permute.xlu0 %613
        %v616 = vperm.slane %v521, 2
        %v617 = vmax.f32 %v614, %v616
        %v618 = vsub.f32 %v611, %v617
        %v619 = vmax.f32 %v618, 0.0
        %v620 = vmul.f32 %v575, %v619
        %v621 = vmax.f32 %v608, %v610
        %v622 = vmin.f32 %v614, %v616
        %v623 = vsub.f32 %v621, %v622
        %v624 = vmax.f32 %v623, 0.0
        %v625 = vmul.f32 %v580, %v624
        %626 = vrot.lane.b32.xlu0 %v543, 126
        %v627 = vpop.permute.xlu0 %626
        %v629 = vmul.f32 %v585, %v627
        %v630 = vrot.slane %v544, 2
        %v632 = vmul.f32 %v589, %v630
        %v633 = vmul.f32 %v605, 0.16666667
        %635 = vset.pattern.permute.xlu0 0
        %636 = vperm.xlu0 %635, %v629
        %v637 = vpop.permute.xlu0 %636
        %v639 = vperm.slane %v632, 0
        %v640 = vadd.f32 %v637, %v639
        %v641 = vsub.f32 %v640, %v620
        %v642 = vadd.f32 %v641, 1.1920929e-07
        %v643 = vrcp.pop %v642
        %v644 = vmul.f32 %v642, %v643
        %v645 = vsub.f32 1.0, %v644
        %v646 = vmul.f32 %v643, %v645
        %v647 = vadd.f32 %v643, %v646
        %vm648 = vweird.f32 %v642
        %vm649 = vweird.f32 %v643
        %vm650 = vmor %vm648, %vm649
        %v651 = vsel %vm650, %v643, %v647
        %v652 = vand.u32 2147483647, %v642
        %vm653 = vcmp.eq.f32.partialorder %v652, 8.507059e+37
        %v654 = vand.u32 %v642, 2147483648
        %v655 = vor.u32 1.1754944e-38, %v654
        %v656 = vsel %vm653, %v655, %v651
        %v657 = vmul.f32 %v620, %v656
        %v658 = vsub.f32 %v625, %v641
        %v659 = vadd.f32 %v625, 1.1920929e-07
        %v660 = vrcp.pop %v659
        %v661 = vmul.f32 %v659, %v660
        %v662 = vsub.f32 1.0, %v661
        %v663 = vmul.f32 %v660, %v662
        %v664 = vadd.f32 %v660, %v663
        %vm665 = vweird.f32 %v659
        %vm666 = vweird.f32 %v660
        %vm667 = vmor %vm665, %vm666
        %v668 = vsel %vm667, %v660, %v664
        %v669 = vand.u32 2147483647, %v659
        %vm670 = vcmp.eq.f32.partialorder %v669, 8.507059e+37
        %v671 = vand.u32 %v659, 2147483648
        %v672 = vor.u32 1.1754944e-38, %v671
        %v673 = vsel %vm670, %v672, %v668
        %v674 = vmul.f32 %v658, %v673
        %v675 = vsub.f32 %v657, %v674
        %v676 = vmul.f32 %v633, 5.0
        %v677 = vsub.f32 1.0, %v675
        %v678 = vmul.f32 %v677, 2.0
        %v679 = vadd.f32 %v676, %v678
        %681 = vset.pattern.permute.xlu0 6
        %682 = vperm.xlu0 %681, %v491
        %v683 = vpop.permute.xlu0 %682
        %v685 = vadd.f32 %v683, %v679
        %v686 = vperm.slane %v449, 0
        %v687 = vmul.f32 %v686, %v685
        %v688 = vperm.slane %v449, 1
        %690 = vset.pattern.permute.xlu0 6
        %691 = vperm.xlu0 %690, %v492
        %v692 = vpop.permute.xlu0 %691
        %v694 = vmul.f32 %v688, %v692
        %v695 = vadd.f32 %v687, %v694
        %s696 = scalar_lea.vmem %s168, 8 [#allocation5]
        %697 = vst [vmem:[%s696] sm:$0xff] %v695
        %699 = vset.pattern.permute.xlu0 6
        %700 = vperm.xlu0 %699, %v490
        %v701 = vpop.permute.xlu0 %700
        %v703 = vsel %vm432, %v701, 0.0
        %705 = vset.pattern.permute.xlu0 6
        %706 = vperm.xlu0 %705, %v488
        %v707 = vpop.permute.xlu0 %706
        %v709 = vsel %vm431, %v707, %v703
        %s710 = scalar_lea.vmem %s175, 8 [#allocation6]
        %711 = vst [vmem:[%s710] sm:$0xff] %v709
        %s712 = sand.u32 %s57, 1
        %s713 = scalar_lea.sflag [#allocation4], %s712
        %s714 = sand.u32 %s57, 1
        %s715 = smul.addr %s714, 16
        %s716 = scalar_lea.vmem [#allocation5], %s715
        %s717 = sand.u32 %s83, 1
        %s718 = scalar_lea.sflag [#allocation7], %s717
        %s719 = sand.u32 %s83, 1
        %s720 = smul.addr %s719, 16
        %s721 = scalar_lea.vmem [#allocation6], %s720
        // Predicated region
        $region29: #{tpu_custom_call.1} parent=23 // pred_check
          %p722 = pneg %p67
        $region30: #{tpu_custom_call.1} parent=23 // pred_check_branch
          %724 = sbr.rel (%p722) target = $region32
        $region31: #{tpu_custom_call.1} parent=23 // pred_region
          %s725 = smul.u32 2, %s23
          %727 = vsyncadd %s713, 0
          %s728 = smul.addr %s725, 8
          %s729 = scalar_lea.hbm %s1, %s728
          %s730 = sshll.u32 %s716, 4
          %s731 = int_to_ptr.vmem [resolvable:$true] %s730
          %s732 = sshll.u32 %s729, 4
          %s733 = int_to_ptr.hbm [resolvable:$true] %s732
          %738 = dma.vmem_to_hbm [thread:$0]  %s731, 256, %s733, %s713, 128, 128, 8
        $region32: #{tpu_custom_call.1} parent=23 // pred_fallthru
          _
        // Predicated region
        $region33: #{tpu_custom_call.1} parent=23 // pred_check
          %p739 = pneg %p93
        $region34: #{tpu_custom_call.1} parent=23 // pred_check_branch
          %741 = sbr.rel (%p739) target = $region36
        $region35: #{tpu_custom_call.1} parent=23 // pred_region
          %s742 = smul.u32 2, %s23
          %744 = vsyncadd %s718, 0
          %s745 = smul.addr %s742, 8
          %s746 = scalar_lea.hbm %s2, %s745
          %s747 = sshll.u32 %s721, 4
          %s748 = int_to_ptr.vmem [resolvable:$true] %s747
          %s749 = sshll.u32 %s746, 4
          %s750 = int_to_ptr.hbm [resolvable:$true] %s749
          %755 = dma.vmem_to_hbm [thread:$0]  %s748, 256, %s750, %s718, 128, 128, 8
        $region36: #{tpu_custom_call.1} parent=23 // pred_fallthru
          _
      $region24: #{tpu_custom_call.1} parent=5 // pred_fallthru
        _
      %p756 = scmp.le.s32.totalorder 2, %s18
      // Predicated region
      $region37: #{tpu_custom_call.1} parent=5 // pred_check
        %p757 = pneg %p756
      $region38: #{tpu_custom_call.1} parent=5 // pred_check_branch
        %759 = sbr.rel (%p757) target = $region40
      $region39: #{tpu_custom_call.1} parent=5 // pred_region
        %s760 = ssub.s32 %s18, 2
        // Predicated region
        $region41: #{tpu_custom_call.1} parent=39 // pred_check
          %p761 = pneg %p73
        $region42: #{tpu_custom_call.1} parent=39 // pred_check_branch
          %763 = sbr.rel (%p761) target = $region44
        $region43: #{tpu_custom_call.1} parent=39 // pred_region
          %s764 = sand.u32 %s58, 1
          %s765 = scalar_lea.sflag [#allocation4], %s764
          %s766 = sand.u32 %s58, 1
          %s767 = smul.addr %s766, 16
          %s768 = scalar_lea.vmem [#allocation5], %s767
          %770 = dma.done %s765, 256
        $region44: #{tpu_custom_call.1} parent=39 // pred_fallthru
          _
        // Predicated region
        $region45: #{tpu_custom_call.1} parent=39 // pred_check
          %p771 = pneg %p99
        $region46: #{tpu_custom_call.1} parent=39 // pred_check_branch
          %773 = sbr.rel (%p771) target = $region48
        $region47: #{tpu_custom_call.1} parent=39 // pred_region
          %s774 = sand.u32 %s84, 1
          %s775 = scalar_lea.sflag [#allocation7], %s774
          %s776 = sand.u32 %s84, 1
          %s777 = smul.addr %s776, 16
          %s778 = scalar_lea.vmem [#allocation6], %s777
          %780 = dma.done %s775, 256
        $region48: #{tpu_custom_call.1} parent=39 // pred_fallthru
          _
      $region40: #{tpu_custom_call.1} parent=5 // pred_fallthru
        _
    $region6: #{tpu_custom_call.1} parent=1 // loop_footer
      %s22 = sadd.s32 1, %s18
    $region7: #{tpu_custom_call.1} parent=1 // loop_footer_branch
      %17 = sbr.rel target = $region3
    $region8: #{tpu_custom_call.1} parent=1 // loop_exit
      _
    %781 = vsyncpa [#allocation3], 1
    %s782 = scalar_lea.sflag [#allocation3], 1
    %783 = vsyncpa %s782, 1
    %784 = vsyncpa [#allocation4], 1
    %s785 = scalar_lea.sflag [#allocation4], 1
    %786 = vsyncpa %s785, 1
    %787 = vsyncpa [#allocation7], 1
    %s788 = scalar_lea.sflag [#allocation7], 1
    %789 = vsyncpa %s788, 1

</llo_original>
